<compile_context>
chip_gen: v7x
topology: tpu7x:2x2x1
jax: 0.10.0
libtpu: 0.0.40
codegen_flags: <defaults>
</compile_context>

<pallas_src>
import numpy as np
import jax
import jax.numpy as jnp
from jax import lax
from jax.experimental import pallas as pl
from jax.experimental.pallas import tpu as pltpu  # noqa: F401  (CompilerParams needed at real sizes)

# ---------------- small, self-consistent config (scaled-down ModelArgs) ----------------
DIM = 128                 # args.dim
INTER_DIM = 256           # args.inter_dim (dense MLP, since layer_id=0 < n_dense_layers)
N_HEADS = 2               # args.n_heads
KV_LORA_RANK = 64         # args.kv_lora_rank
QK_NOPE_HEAD_DIM = 32     # args.qk_nope_head_dim
QK_ROPE_HEAD_DIM = 16     # args.qk_rope_head_dim
ROPE_HALF = QK_ROPE_HEAD_DIM // 2
QK_HEAD_DIM = QK_NOPE_HEAD_DIM + QK_ROPE_HEAD_DIM
V_HEAD_DIM = 32           # args.v_head_dim
ROPE_THETA = 10000.0
EPS = 1e-6
B = 2
S = 8                     # per-batch sequence length (power of 2 -> shift-based batch id)
START_POS = 0
SOFTMAX_SCALE = QK_HEAD_DIM ** -0.5   # max_seq_len <= original_seq_len -> no yarn mscale
LOG2_S = S.bit_length() - 1
assert (1 << LOG2_S) == S, "kernel uses shifts for the batch-block mask; S must be a power of 2"

# fused hb-projection column layout (offsets chosen so no slice crosses a 128-lane boundary)
KV_LAT_OFF = 0
Q_NOPE_OFF = KV_LAT_OFF + KV_LORA_RANK                      # 64
Q_PE_OFF = Q_NOPE_OFF + N_HEADS * QK_NOPE_HEAD_DIM          # 128
K_PE_OFF = Q_PE_OFF + N_HEADS * QK_ROPE_HEAD_DIM            # 160
FUSED_HB_DIM = K_PE_OFF + QK_ROPE_HEAD_DIM                  # 176


# ---------------------------------- Pallas kernel ----------------------------------
def block_kernel(x_ref, cs_ref,
                 attn_norm_w_ref, w_hb_ref, kv_norm_w_ref, w_kvb_ref, wo_ref,
                 ffn_norm_w_ref, w13_ref, w2_ref,
                 out_ref):
    f32 = jnp.float32
    bf16 = jnp.bfloat16

    x = x_ref[...].astype(f32)                       # (BS, DIM), all batch*seq rows at once
    cos_h = cs_ref[:, :ROPE_HALF]                    # (BS, ROPE_HALF) f32
    sin_h = cs_ref[:, ROPE_HALF:]                    # (BS, ROPE_HALF) f32
    BS = x.shape[0]

    def rmsnorm(v, w):                               # v: (BS, D), w: (1, D)
        var = jnp.mean(v * v, axis=-1, keepdims=True)
        return v * lax.rsqrt(var + EPS) * w

    def mm(a, b):                                    # (m,k) @ (k,n), f32 accumulate on the MXU
        return lax.dot_general(a, b, (((1,), (0,)), ((), ())),
                               preferred_element_type=f32)

    def mm_t(a, b):                                  # (m,k), (n,k) -> (m,n)
        return lax.dot_general(a, b, (((1,), (1,)), ((), ())),
                               preferred_element_type=f32)

    def rope(t):                                     # t: (BS, ROPE) in [even | odd] layout
        t1 = t[:, :ROPE_HALF]
        t2 = t[:, ROPE_HALF:]
        return jnp.concatenate([t1 * cos_h - t2 * sin_h,
                                t2 * cos_h + t1 * sin_h], axis=-1)

    # in-kernel block-diagonal causal mask (no cross-batch attention, causal within batch)
    row = lax.broadcasted_iota(jnp.int32, (BS, BS), 0)
    col = lax.broadcasted_iota(jnp.int32, (BS, BS), 1)
    allowed = jnp.logical_and((row >> LOG2_S) == (col >> LOG2_S), col <= row)
    mask = jnp.where(allowed, jnp.float32(0.0), jnp.float32(-1e30))

    # ---------------- MLA attention ----------------
    h = rmsnorm(x, attn_norm_w_ref[...].astype(f32))
    hb = h.astype(bf16)                                          # bf16 MXU operand

    # ONE fused projection from hb: [kv_lat | q_nope(all heads) | q_pe(all heads) | k_pe]
    fused = mm(hb, w_hb_ref[...])                                # (BS, FUSED_HB_DIM)
    kv_lat = rmsnorm(fused[:, KV_LAT_OFF:KV_LAT_OFF + KV_LORA_RANK],
                     kv_norm_w_ref[...].astype(f32))             # (BS, KV_LORA)
    q_nope_all = fused[:, Q_NOPE_OFF:Q_NOPE_OFF + N_HEADS * QK_NOPE_HEAD_DIM]
    q_pe_all = fused[:, Q_PE_OFF:Q_PE_OFF + N_HEADS * QK_ROPE_HEAD_DIM]
    k_pe = rope(fused[:, K_PE_OFF:K_PE_OFF + QK_ROPE_HEAD_DIM])  # (BS, ROPE), shared by heads

    # ONE fused kv_b projection: per head [k_nope(32) | v(32)] contiguous -> lane-dense 128
    kvb = mm(kv_lat.astype(bf16), w_kvb_ref[...])                # (BS, H*(NOPE+V))

    o_heads = []
    for hh in range(N_HEADS):                                    # static unroll over heads
        q_nope = q_nope_all[:, hh * QK_NOPE_HEAD_DIM:(hh + 1) * QK_NOPE_HEAD_DIM]
        q_pe = rope(q_pe_all[:, hh * QK_ROPE_HEAD_DIM:(hh + 1) * QK_ROPE_HEAD_DIM])
        base = hh * (QK_NOPE_HEAD_DIM + V_HEAD_DIM)
        k_nope = kvb[:, base:base + QK_NOPE_HEAD_DIM]
        v_h = kvb[:, base + QK_NOPE_HEAD_DIM:base + QK_NOPE_HEAD_DIM + V_HEAD_DIM]
        # single K=48 score contraction over [nope | rope]
        q_full = jnp.concatenate([q_nope, q_pe], axis=-1)        # (BS, 48)
        k_full = jnp.concatenate([k_nope, k_pe], axis=-1)        # (BS, 48)
        scores = mm_t(q_full, k_full) * SOFTMAX_SCALE + mask
        m = jnp.max(scores, axis=-1, keepdims=True)              # fp32 softmax, as in reference
        e = jnp.exp(scores - m)
        p = e * pl.reciprocal(jnp.sum(e, axis=-1, keepdims=True), approx=True)
        o_heads.append(mm(p, v_h))                               # (BS, V)

    o_cat = jnp.concatenate(o_heads, axis=-1)                    # (BS, H*V)
    attn_out = mm(o_cat.astype(bf16), wo_ref[...])               # single output projection
    x1 = x + attn_out

    # ---------------- dense MLP: w2(silu(w1(x)) * w3(x)), gate/up fused ----------------
    h2 = rmsnorm(x1, ffn_norm_w_ref[...].astype(f32))
    gu = mm(h2.astype(bf16), w13_ref[...])                       # (BS, 2*INTER)
    g = gu[:, :INTER_DIM]                                        # lane-aligned slices (128-mult)
    u = gu[:, INTER_DIM:]
    sig = 0.5 * (jnp.tanh(0.5 * g) + 1.0)                        # sigmoid via single EUP tanh
    x2 = x1 + mm((g * sig * u).astype(bf16), w2_ref[...])

    out_ref[...] = x2.astype(out_ref.dtype)


# ---------------------------------- wrapper ----------------------------------
def block_forward(x, cs, weights):
    """x: (B, S, DIM) f32; cs: (B*S, 2*ROPE_HALF) fused [cos | sin] table.

    Single invocation (no grid) at toy sizes.  At real DeepSeek dims: add an M-row grid
    (dimension_semantics=("parallel",)) for v7x's 2 TCs, tile weight N/K with explicit
    vmem_limit_bytes (v7x: 64 MiB), and use a flash-style kv-tiled attention.
    """
    bsz, seqlen, dim = x.shape
    x2d = x.reshape(bsz * seqlen, dim)
    out2d = pl.pallas_call(
        block_kernel,
        out_shape=jax.ShapeDtypeStruct((bsz * seqlen, dim), x.dtype),
    )(x2d, cs, *weights)
    return out2d.reshape(bsz, seqlen, dim)


# ---------------------------------- reference (plain JAX) ----------------------------------
def reference_block(x, params, mask, cosf, sinf):
    (attn_norm_w, wq, wkv_a, kv_norm_w, wkv_b, wo, ffn_norm_w, w1, w2, w3) = params

    def rms(v, w):
        return v * lax.rsqrt(jnp.mean(v * v, axis=-1, keepdims=True) + EPS) * w

    def rope(t, c, s):  # interleaved complex pairs, as in DeepSeek apply_rotary_emb
        tr = t.reshape(t.shape[:-1] + (QK_ROPE_HEAD_DIM // 2, 2))
        rot = jnp.stack([-tr[..., 1], tr[..., 0]], axis=-1).reshape(t.shape)
        return t * c + rot * s

    bsz, seqlen, _ = x.shape
    h = rms(x, attn_norm_w[0])
    q = (h @ wq).reshape(bsz, seqlen, N_HEADS, QK_HEAD_DIM)
    q_nope = q[..., :QK_NOPE_HEAD_DIM]
    q_pe = rope(q[..., QK_NOPE_HEAD_DIM:], cosf[None, :, None, :], sinf[None, :, None, :])
    kv = h @ wkv_a
    kv_lat = rms(kv[..., :KV_LORA_RANK], kv_norm_w[0])
    k_pe = rope(kv[..., KV_LORA_RANK:], cosf[None, :, :], sinf[None, :, :])
    kvb = (kv_lat @ wkv_b).reshape(bsz, seqlen, N_HEADS, QK_NOPE_HEAD_DIM + V_HEAD_DIM)
    k_nope = kvb[..., :QK_NOPE_HEAD_DIM]
    v = kvb[..., QK_NOPE_HEAD_DIM:]
    qf = jnp.concatenate([q_nope, q_pe], axis=-1)
    kf = jnp.concatenate(
        [k_nope, jnp.broadcast_to(k_pe[:, :, None, :], (bsz, seqlen, N_HEADS, QK_ROPE_HEAD_DIM))],
        axis=-1)
    scores = jnp.einsum('bshd,bthd->bsht', qf, kf) * SOFTMAX_SCALE + mask[None, :, None, :]
    p = jax.nn.softmax(scores, axis=-1)
    o = jnp.einsum('bsht,bthd->bshd', p, v).reshape(bsz, seqlen, N_HEADS * V_HEAD_DIM)
    x1 = x + o @ wo
    h2 = rms(x1, ffn_norm_w[0])
    g = h2 @ w1
    return x1 + ((g * jax.nn.sigmoid(g)) * (h2 @ w3)) @ w2


# ---------------------------------- main ----------------------------------
if __name__ == "__main__":
    key = jax.random.PRNGKey(0)
    ks = jax.random.split(key, 8)
    scale = 0.05
    f32, bf16 = jnp.float32, jnp.bfloat16

    def rnd(w):  # round matmul weights to bf16-representable values (kernel uses bf16, ref f32)
        return w.astype(bf16).astype(f32)

    attn_norm_w = jnp.ones((1, DIM), f32)
    kv_norm_w = jnp.ones((1, KV_LORA_RANK), f32)
    ffn_norm_w = jnp.ones((1, DIM), f32)
    wq = rnd(jax.random.normal(ks[0], (DIM, N_HEADS * QK_HEAD_DIM), f32) * scale)
    wkv_a = rnd(jax.random.normal(ks[1], (DIM, KV_LORA_RANK + QK_ROPE_HEAD_DIM), f32) * scale)
    wkv_b = rnd(jax.random.normal(ks[2], (KV_LORA_RANK, N_HEADS * (QK_NOPE_HEAD_DIM + V_HEAD_DIM)),
                                  f32) * scale)
    wo = rnd(jax.random.normal(ks[3], (N_HEADS * V_HEAD_DIM, DIM), f32) * scale)
    w1 = rnd(jax.random.normal(ks[4], (DIM, INTER_DIM), f32) * scale)
    w2 = rnd(jax.random.normal(ks[5], (INTER_DIM, DIM), f32) * scale)
    w3 = rnd(jax.random.normal(ks[6], (DIM, INTER_DIM), f32) * scale)
    params = (attn_norm_w, wq, wkv_a, kv_norm_w, wkv_b, wo, ffn_norm_w, w1, w2, w3)

    x = jax.random.normal(ks[7], (B, S, DIM), f32)

    # rotary tables (start_pos = 0)
    inv = 1.0 / (ROPE_THETA ** (jnp.arange(0, QK_ROPE_HEAD_DIM, 2, dtype=f32) / QK_ROPE_HEAD_DIM))
    t = jnp.arange(START_POS, START_POS + S, dtype=f32)
    freqs = jnp.outer(t, inv)                               # (S, ROPE/2)
    cos_h, sin_h = jnp.cos(freqs), jnp.sin(freqs)
    # pairwise-expanded tables for the plain-JAX reference (interleaved layout)
    cosf = jnp.repeat(cos_h, 2, axis=-1)
    sinf = jnp.repeat(sin_h, 2, axis=-1)
    # single fused per-flat-row (B*S) [cos | sin] half table for the kernel ([even|odd] layout)
    cs = jnp.concatenate([jnp.tile(cos_h, (B, 1)), jnp.tile(sin_h, (B, 1))], axis=1)

    # ---- kernel-side weight repacking: head axis packed into lanes, one fused hb weight ----
    perm = np.concatenate([np.arange(0, QK_ROPE_HEAD_DIM, 2),
                           np.arange(1, QK_ROPE_HEAD_DIM, 2)])        # interleaved -> [even|odd]
    wq_h = wq.reshape(DIM, N_HEADS, QK_HEAD_DIM)
    wq_nope_cols = wq_h[:, :, :QK_NOPE_HEAD_DIM].reshape(DIM, N_HEADS * QK_NOPE_HEAD_DIM)
    wq_pe_cols = wq_h[:, :, QK_NOPE_HEAD_DIM:][:, :, perm].reshape(DIM, N_HEADS * QK_ROPE_HEAD_DIM)
    wkv_a_lat = wkv_a[:, :KV_LORA_RANK]
    wkv_a_pe = wkv_a[:, KV_LORA_RANK:][:, perm]
    # fused layout: [kv_lat | q_nope(all heads) | q_pe(all heads) | k_pe]  -> (DIM, 176)
    w_hb_fused = jnp.concatenate([wkv_a_lat, wq_nope_cols, wq_pe_cols, wkv_a_pe],
                                 axis=1).astype(bf16)
    assert w_hb_fused.shape == (DIM, FUSED_HB_DIM)
    w_kvb_fused = wkv_b.astype(bf16)                      # already per-head [k_nope | v] contiguous
    w13 = jnp.concatenate([w1, w3], axis=1).astype(bf16)  # fused gate/up
    kernel_weights = (attn_norm_w, w_hb_fused, kv_norm_w, w_kvb_fused, wo.astype(bf16),
                      ffn_norm_w, w13, w2.astype(bf16))

    out = block_forward(x, cs, kernel_weights)
    out = jax.block_until_ready(out)

    # additive causal attention mask for the reference (prefill, start_pos = 0)
    r = jnp.arange(S)
    mask = jnp.where(r[None, :] > r[:, None], -1e30, 0.0).astype(f32)
    ref = reference_block(x, params, mask, cosf, sinf)
    np.testing.assert_allclose(np.asarray(out), np.asarray(ref), atol=5e-2, rtol=5e-2)

    print("KERNEL_OK")
</pallas_src>

<mosaic_0001>
module attributes {stable_mosaic.version = 11 : i64} {
  func.func @block_kernel(%arg0: memref<16x128xf32, #tpu.memory_space<vmem>>, %arg1: memref<16x16xf32, #tpu.memory_space<vmem>>, %arg2: memref<1x128xf32, #tpu.memory_space<vmem>>, %arg3: memref<128x176xbf16, #tpu.memory_space<vmem>>, %arg4: memref<1x64xf32, #tpu.memory_space<vmem>>, %arg5: memref<64x128xbf16, #tpu.memory_space<vmem>>, %arg6: memref<64x128xbf16, #tpu.memory_space<vmem>>, %arg7: memref<1x128xf32, #tpu.memory_space<vmem>>, %arg8: memref<128x512xbf16, #tpu.memory_space<vmem>>, %arg9: memref<256x128xbf16, #tpu.memory_space<vmem>>, %arg10: memref<16x128xf32, #tpu.memory_space<vmem>>) attributes {dimension_semantics = [], scalar_prefetch = 0 : i64, scratch_operands = 0 : i64, tpu.core_type = #tpu.core_type<tc>} {
    %c0 = arith.constant 0 : index
    %c0_0 = arith.constant 0 : index
    %0 = vector.load %arg0[%c0, %c0_0] : memref<16x128xf32, #tpu.memory_space<vmem>>, vector<16x128xf32>
    %c0_1 = arith.constant 0 : index
    %c0_2 = arith.constant 0 : index
    %1 = vector.load %arg1[%c0_1, %c0_2] : memref<16x16xf32, #tpu.memory_space<vmem>>, vector<16x8xf32>
    %c0_3 = arith.constant 0 : index
    %c8 = arith.constant 8 : index
    %2 = vector.load %arg1[%c0_3, %c8] : memref<16x16xf32, #tpu.memory_space<vmem>>, vector<16x8xf32>
    %3 = tpu.iota {dimensions = array<i32: 0>} : vector<16x16xi32>
    %4 = tpu.iota {dimensions = array<i32: 1>} : vector<16x16xi32>
    %c3_i32 = arith.constant 3 : i32
    %5 = vector.broadcast %c3_i32 : i32 to vector<16x16xi32>
    %6 = arith.shrsi %3, %5 : vector<16x16xi32>
    %c3_i32_4 = arith.constant 3 : i32
    %7 = vector.broadcast %c3_i32_4 : i32 to vector<16x16xi32>
    %8 = arith.shrsi %4, %7 : vector<16x16xi32>
    %9 = arith.cmpi eq, %6, %8 : vector<16x16xi32>
    %10 = arith.cmpi sle, %4, %3 : vector<16x16xi32>
    %11 = arith.andi %9, %10 : vector<16x16xi1>
    %cst = arith.constant 0.000000e+00 : f32
    %cst_5 = arith.constant -1.000000e+30 : f32
    %12 = vector.broadcast %cst : f32 to vector<16x16xf32>
    %13 = vector.broadcast %cst_5 : f32 to vector<16x16xf32>
    %14 = arith.select %11, %12, %13 : vector<16x16xi1>, vector<16x16xf32>
    %c0_6 = arith.constant 0 : index
    %c0_7 = arith.constant 0 : index
    %15 = vector.load %arg2[%c0_6, %c0_7] : memref<1x128xf32, #tpu.memory_space<vmem>>, vector<1x128xf32>
    %16 = arith.mulf %0, %0 : vector<16x128xf32>
    %cst_8 = arith.constant dense<0.000000e+00> : vector<16xf32>
    %17 = vector.multi_reduction <add>, %16, %cst_8 [1] : vector<16x128xf32> to vector<16xf32>
    %18 = vector.shape_cast %17 : vector<16xf32> to vector<16x1xf32>
    %cst_9 = arith.constant 1.280000e+02 : f32
    %19 = vector.broadcast %cst_9 : f32 to vector<16x1xf32>
    %20 = arith.divf %18, %19 : vector<16x1xf32>
    %cst_10 = arith.constant 9.99999997E-7 : f32
    %21 = vector.broadcast %cst_10 : f32 to vector<16x1xf32>
    %22 = arith.addf %20, %21 : vector<16x1xf32>
    %23 = math.rsqrt %22 : vector<16x1xf32>
    %24 = vector.broadcast %23 : vector<16x1xf32> to vector<16x128xf32>
    %25 = arith.mulf %0, %24 : vector<16x128xf32>
    %26 = vector.broadcast %15 : vector<1x128xf32> to vector<16x128xf32>
    %27 = arith.mulf %25, %26 : vector<16x128xf32>
    %28 = arith.truncf %27 : vector<16x128xf32> to vector<16x128xbf16>
    %c0_11 = arith.constant 0 : index
    %c0_12 = arith.constant 0 : index
    %29 = vector.load %arg3[%c0_11, %c0_12] : memref<128x176xbf16, #tpu.memory_space<vmem>>, vector<128x176xbf16>
    %cst_13 = arith.constant dense<0.000000e+00> : vector<16x176xf32>
    %30 = tpu.matmul %28, %29, %cst_13 {dimension_numbers = #tpu.dot_dimension_numbers<[1], [0], [0], [1], [0, 0, 1, 1], [], []>} : vector<16x128xbf16>, vector<128x176xbf16>, vector<16x176xf32> -> vector<16x176xf32>
    %31 = vector.extract_strided_slice %30 {offsets = [0, 0], sizes = [16, 64], strides = [1, 1]} : vector<16x176xf32> to vector<16x64xf32>
    %c0_14 = arith.constant 0 : index
    %c0_15 = arith.constant 0 : index
    %32 = vector.load %arg4[%c0_14, %c0_15] : memref<1x64xf32, #tpu.memory_space<vmem>>, vector<1x64xf32>
    %33 = arith.mulf %31, %31 : vector<16x64xf32>
    %cst_16 = arith.constant dense<0.000000e+00> : vector<16xf32>
    %34 = vector.multi_reduction <add>, %33, %cst_16 [1] : vector<16x64xf32> to vector<16xf32>
    %35 = vector.shape_cast %34 : vector<16xf32> to vector<16x1xf32>
    %cst_17 = arith.constant 6.400000e+01 : f32
    %36 = vector.broadcast %cst_17 : f32 to vector<16x1xf32>
    %37 = arith.divf %35, %36 : vector<16x1xf32>
    %cst_18 = arith.constant 9.99999997E-7 : f32
    %38 = vector.broadcast %cst_18 : f32 to vector<16x1xf32>
    %39 = arith.addf %37, %38 : vector<16x1xf32>
    %40 = math.rsqrt %39 : vector<16x1xf32>
    %41 = vector.broadcast %40 : vector<16x1xf32> to vector<16x64xf32>
    %42 = arith.mulf %31, %41 : vector<16x64xf32>
    %43 = vector.broadcast %32 : vector<1x64xf32> to vector<16x64xf32>
    %44 = arith.mulf %42, %43 : vector<16x64xf32>
    %45 = vector.extract_strided_slice %30 {offsets = [0, 64], sizes = [16, 64], strides = [1, 1]} : vector<16x176xf32> to vector<16x64xf32>
    %46 = vector.extract_strided_slice %30 {offsets = [0, 128], sizes = [16, 32], strides = [1, 1]} : vector<16x176xf32> to vector<16x32xf32>
    %47 = vector.extract_strided_slice %30 {offsets = [0, 160], sizes = [16, 16], strides = [1, 1]} : vector<16x176xf32> to vector<16x16xf32>
    %48 = vector.extract_strided_slice %47 {offsets = [0, 0], sizes = [16, 8], strides = [1, 1]} : vector<16x16xf32> to vector<16x8xf32>
    %49 = vector.extract_strided_slice %47 {offsets = [0, 8], sizes = [16, 8], strides = [1, 1]} : vector<16x16xf32> to vector<16x8xf32>
    %50 = arith.mulf %48, %1 : vector<16x8xf32>
    %51 = arith.mulf %49, %2 : vector<16x8xf32>
    %52 = arith.subf %50, %51 : vector<16x8xf32>
    %53 = arith.mulf %49, %1 : vector<16x8xf32>
    %54 = arith.mulf %48, %2 : vector<16x8xf32>
    %55 = arith.addf %53, %54 : vector<16x8xf32>
    %56 = tpu.concatenate %52, %55 in 1 : vector<16x8xf32>, vector<16x8xf32> -> vector<16x16xf32>
    %57 = arith.truncf %44 : vector<16x64xf32> to vector<16x64xbf16>
    %c0_19 = arith.constant 0 : index
    %c0_20 = arith.constant 0 : index
    %58 = vector.load %arg5[%c0_19, %c0_20] : memref<64x128xbf16, #tpu.memory_space<vmem>>, vector<64x128xbf16>
    %cst_21 = arith.constant dense<0.000000e+00> : vector<16x128xf32>
    %59 = tpu.matmul %57, %58, %cst_21 {dimension_numbers = #tpu.dot_dimension_numbers<[1], [0], [0], [1], [0, 0, 1, 1], [], []>} : vector<16x64xbf16>, vector<64x128xbf16>, vector<16x128xf32> -> vector<16x128xf32>
    %60 = vector.extract_strided_slice %45 {offsets = [0, 0], sizes = [16, 32], strides = [1, 1]} : vector<16x64xf32> to vector<16x32xf32>
    %61 = vector.extract_strided_slice %46 {offsets = [0, 0], sizes = [16, 16], strides = [1, 1]} : vector<16x32xf32> to vector<16x16xf32>
    %62 = vector.extract_strided_slice %61 {offsets = [0, 0], sizes = [16, 8], strides = [1, 1]} : vector<16x16xf32> to vector<16x8xf32>
    %63 = vector.extract_strided_slice %61 {offsets = [0, 8], sizes = [16, 8], strides = [1, 1]} : vector<16x16xf32> to vector<16x8xf32>
    %64 = arith.mulf %62, %1 : vector<16x8xf32>
    %65 = arith.mulf %63, %2 : vector<16x8xf32>
    %66 = arith.subf %64, %65 : vector<16x8xf32>
    %67 = arith.mulf %63, %1 : vector<16x8xf32>
    %68 = arith.mulf %62, %2 : vector<16x8xf32>
    %69 = arith.addf %67, %68 : vector<16x8xf32>
    %70 = tpu.concatenate %66, %69 in 1 : vector<16x8xf32>, vector<16x8xf32> -> vector<16x16xf32>
    %71 = vector.extract_strided_slice %59 {offsets = [0, 0], sizes = [16, 32], strides = [1, 1]} : vector<16x128xf32> to vector<16x32xf32>
    %72 = vector.extract_strided_slice %59 {offsets = [0, 32], sizes = [16, 32], strides = [1, 1]} : vector<16x128xf32> to vector<16x32xf32>
    %73 = tpu.concatenate %60, %70 in 1 : vector<16x32xf32>, vector<16x16xf32> -> vector<16x48xf32>
    %74 = tpu.concatenate %71, %56 in 1 : vector<16x32xf32>, vector<16x16xf32> -> vector<16x48xf32>
    %cst_22 = arith.constant dense<0.000000e+00> : vector<16x16xf32>
    %75 = tpu.matmul %73, %74, %cst_22 {dimension_numbers = #tpu.dot_dimension_numbers<[1], [1], [0], [0], [0, 0, 1, 0], [], []>} : vector<16x48xf32>, vector<16x48xf32>, vector<16x16xf32> -> vector<16x16xf32>
    %cst_23 = arith.constant 0.144337565 : f32
    %76 = vector.broadcast %cst_23 : f32 to vector<16x16xf32>
    %77 = arith.mulf %75, %76 : vector<16x16xf32>
    %78 = arith.addf %77, %14 : vector<16x16xf32>
    %cst_24 = arith.constant dense<0xFF800000> : vector<16xf32>
    %79 = vector.multi_reduction <maximumf>, %78, %cst_24 [1] : vector<16x16xf32> to vector<16xf32>
    %80 = vector.shape_cast %79 : vector<16xf32> to vector<16x1xf32>
    %81 = vector.broadcast %80 : vector<16x1xf32> to vector<16x16xf32>
    %82 = arith.subf %78, %81 : vector<16x16xf32>
    %83 = math.exp %82 : vector<16x16xf32>
    %cst_25 = arith.constant dense<0.000000e+00> : vector<16xf32>
    %84 = vector.multi_reduction <add>, %83, %cst_25 [1] : vector<16x16xf32> to vector<16xf32>
    %85 = vector.shape_cast %84 : vector<16xf32> to vector<16x1xf32>
    %86 = tpu.reciprocal %85 {approx = true} : vector<16x1xf32> -> vector<16x1xf32>
    %87 = vector.broadcast %86 : vector<16x1xf32> to vector<16x16xf32>
    %88 = arith.mulf %83, %87 : vector<16x16xf32>
    %cst_26 = arith.constant dense<0.000000e+00> : vector<16x32xf32>
    %89 = tpu.matmul %88, %72, %cst_26 {dimension_numbers = #tpu.dot_dimension_numbers<[1], [0], [0], [1], [0, 0, 1, 1], [], []>} : vector<16x16xf32>, vector<16x32xf32>, vector<16x32xf32> -> vector<16x32xf32>
    %90 = vector.extract_strided_slice %45 {offsets = [0, 32], sizes = [16, 32], strides = [1, 1]} : vector<16x64xf32> to vector<16x32xf32>
    %91 = vector.extract_strided_slice %46 {offsets = [0, 16], sizes = [16, 16], strides = [1, 1]} : vector<16x32xf32> to vector<16x16xf32>
    %92 = vector.extract_strided_slice %91 {offsets = [0, 0], sizes = [16, 8], strides = [1, 1]} : vector<16x16xf32> to vector<16x8xf32>
    %93 = vector.extract_strided_slice %91 {offsets = [0, 8], sizes = [16, 8], strides = [1, 1]} : vector<16x16xf32> to vector<16x8xf32>
    %94 = arith.mulf %92, %1 : vector<16x8xf32>
    %95 = arith.mulf %93, %2 : vector<16x8xf32>
    %96 = arith.subf %94, %95 : vector<16x8xf32>
    %97 = arith.mulf %93, %1 : vector<16x8xf32>
    %98 = arith.mulf %92, %2 : vector<16x8xf32>
    %99 = arith.addf %97, %98 : vector<16x8xf32>
    %100 = tpu.concatenate %96, %99 in 1 : vector<16x8xf32>, vector<16x8xf32> -> vector<16x16xf32>
    %101 = vector.extract_strided_slice %59 {offsets = [0, 64], sizes = [16, 32], strides = [1, 1]} : vector<16x128xf32> to vector<16x32xf32>
    %102 = vector.extract_strided_slice %59 {offsets = [0, 96], sizes = [16, 32], strides = [1, 1]} : vector<16x128xf32> to vector<16x32xf32>
    %103 = tpu.concatenate %90, %100 in 1 : vector<16x32xf32>, vector<16x16xf32> -> vector<16x48xf32>
    %104 = tpu.concatenate %101, %56 in 1 : vector<16x32xf32>, vector<16x16xf32> -> vector<16x48xf32>
    %cst_27 = arith.constant dense<0.000000e+00> : vector<16x16xf32>
    %105 = tpu.matmul %103, %104, %cst_27 {dimension_numbers = #tpu.dot_dimension_numbers<[1], [1], [0], [0], [0, 0, 1, 0], [], []>} : vector<16x48xf32>, vector<16x48xf32>, vector<16x16xf32> -> vector<16x16xf32>
    %cst_28 = arith.constant 0.144337565 : f32
    %106 = vector.broadcast %cst_28 : f32 to vector<16x16xf32>
    %107 = arith.mulf %105, %106 : vector<16x16xf32>
    %108 = arith.addf %107, %14 : vector<16x16xf32>
    %cst_29 = arith.constant dense<0xFF800000> : vector<16xf32>
    %109 = vector.multi_reduction <maximumf>, %108, %cst_29 [1] : vector<16x16xf32> to vector<16xf32>
    %110 = vector.shape_cast %109 : vector<16xf32> to vector<16x1xf32>
    %111 = vector.broadcast %110 : vector<16x1xf32> to vector<16x16xf32>
    %112 = arith.subf %108, %111 : vector<16x16xf32>
    %113 = math.exp %112 : vector<16x16xf32>
    %cst_30 = arith.constant dense<0.000000e+00> : vector<16xf32>
    %114 = vector.multi_reduction <add>, %113, %cst_30 [1] : vector<16x16xf32> to vector<16xf32>
    %115 = vector.shape_cast %114 : vector<16xf32> to vector<16x1xf32>
    %116 = tpu.reciprocal %115 {approx = true} : vector<16x1xf32> -> vector<16x1xf32>
    %117 = vector.broadcast %116 : vector<16x1xf32> to vector<16x16xf32>
    %118 = arith.mulf %113, %117 : vector<16x16xf32>
    %cst_31 = arith.constant dense<0.000000e+00> : vector<16x32xf32>
    %119 = tpu.matmul %118, %102, %cst_31 {dimension_numbers = #tpu.dot_dimension_numbers<[1], [0], [0], [1], [0, 0, 1, 1], [], []>} : vector<16x16xf32>, vector<16x32xf32>, vector<16x32xf32> -> vector<16x32xf32>
    %120 = tpu.concatenate %89, %119 in 1 : vector<16x32xf32>, vector<16x32xf32> -> vector<16x64xf32>
    %121 = arith.truncf %120 : vector<16x64xf32> to vector<16x64xbf16>
    %c0_32 = arith.constant 0 : index
    %c0_33 = arith.constant 0 : index
    %122 = vector.load %arg6[%c0_32, %c0_33] : memref<64x128xbf16, #tpu.memory_space<vmem>>, vector<64x128xbf16>
    %cst_34 = arith.constant dense<0.000000e+00> : vector<16x128xf32>
    %123 = tpu.matmul %121, %122, %cst_34 {dimension_numbers = #tpu.dot_dimension_numbers<[1], [0], [0], [1], [0, 0, 1, 1], [], []>} : vector<16x64xbf16>, vector<64x128xbf16>, vector<16x128xf32> -> vector<16x128xf32>
    %124 = arith.addf %0, %123 : vector<16x128xf32>
    %c0_35 = arith.constant 0 : index
    %c0_36 = arith.constant 0 : index
    %125 = vector.load %arg7[%c0_35, %c0_36] : memref<1x128xf32, #tpu.memory_space<vmem>>, vector<1x128xf32>
    %126 = arith.mulf %124, %124 : vector<16x128xf32>
    %cst_37 = arith.constant dense<0.000000e+00> : vector<16xf32>
    %127 = vector.multi_reduction <add>, %126, %cst_37 [1] : vector<16x128xf32> to vector<16xf32>
    %128 = vector.shape_cast %127 : vector<16xf32> to vector<16x1xf32>
    %cst_38 = arith.constant 1.280000e+02 : f32
    %129 = vector.broadcast %cst_38 : f32 to vector<16x1xf32>
    %130 = arith.divf %128, %129 : vector<16x1xf32>
    %cst_39 = arith.constant 9.99999997E-7 : f32
    %131 = vector.broadcast %cst_39 : f32 to vector<16x1xf32>
    %132 = arith.addf %130, %131 : vector<16x1xf32>
    %133 = math.rsqrt %132 : vector<16x1xf32>
    %134 = vector.broadcast %133 : vector<16x1xf32> to vector<16x128xf32>
    %135 = arith.mulf %124, %134 : vector<16x128xf32>
    %136 = vector.broadcast %125 : vector<1x128xf32> to vector<16x128xf32>
    %137 = arith.mulf %135, %136 : vector<16x128xf32>
    %138 = arith.truncf %137 : vector<16x128xf32> to vector<16x128xbf16>
    %c0_40 = arith.constant 0 : index
    %c0_41 = arith.constant 0 : index
    %139 = vector.load %arg8[%c0_40, %c0_41] : memref<128x512xbf16, #tpu.memory_space<vmem>>, vector<128x512xbf16>
    %cst_42 = arith.constant dense<0.000000e+00> : vector<16x512xf32>
    %140 = tpu.matmul %138, %139, %cst_42 {dimension_numbers = #tpu.dot_dimension_numbers<[1], [0], [0], [1], [0, 0, 1, 1], [], []>} : vector<16x128xbf16>, vector<128x512xbf16>, vector<16x512xf32> -> vector<16x512xf32>
    %141 = vector.extract_strided_slice %140 {offsets = [0, 0], sizes = [16, 256], strides = [1, 1]} : vector<16x512xf32> to vector<16x256xf32>
    %142 = vector.extract_strided_slice %140 {offsets = [0, 256], sizes = [16, 256], strides = [1, 1]} : vector<16x512xf32> to vector<16x256xf32>
    %cst_43 = arith.constant 5.000000e-01 : f32
    %143 = vector.broadcast %cst_43 : f32 to vector<16x256xf32>
    %144 = arith.mulf %143, %141 : vector<16x256xf32>
    %145 = math.tanh %144 : vector<16x256xf32>
    %cst_44 = arith.constant 1.000000e+00 : f32
    %146 = vector.broadcast %cst_44 : f32 to vector<16x256xf32>
    %147 = arith.addf %145, %146 : vector<16x256xf32>
    %cst_45 = arith.constant 5.000000e-01 : f32
    %148 = vector.broadcast %cst_45 : f32 to vector<16x256xf32>
    %149 = arith.mulf %148, %147 : vector<16x256xf32>
    %150 = arith.mulf %141, %149 : vector<16x256xf32>
    %151 = arith.mulf %150, %142 : vector<16x256xf32>
    %152 = arith.truncf %151 : vector<16x256xf32> to vector<16x256xbf16>
    %c0_46 = arith.constant 0 : index
    %c0_47 = arith.constant 0 : index
    %153 = vector.load %arg9[%c0_46, %c0_47] : memref<256x128xbf16, #tpu.memory_space<vmem>>, vector<256x128xbf16>
    %cst_48 = arith.constant dense<0.000000e+00> : vector<16x128xf32>
    %154 = tpu.matmul %152, %153, %cst_48 {dimension_numbers = #tpu.dot_dimension_numbers<[1], [0], [0], [1], [0, 0, 1, 1], [], []>} : vector<16x256xbf16>, vector<256x128xbf16>, vector<16x128xf32> -> vector<16x128xf32>
    %155 = arith.addf %124, %154 : vector<16x128xf32>
    %c0_49 = arith.constant 0 : index
    %c0_50 = arith.constant 0 : index
    %156 = vector.load %arg10[%c0_49, %c0_50] : memref<16x128xf32, #tpu.memory_space<vmem>>, vector<16x128xf32>
    tpu.vector_store %arg10[%c0_49, %c0_50], %155 {strides = array<i32>} : memref<16x128xf32, #tpu.memory_space<vmem>>, vector<16x128xf32>,
    return
  }
}

</mosaic_0001>

<llo_original>
// kernel: tpu_custom_call.1
$region0: #{tpu_custom_call.1}
  #allocation0 [shape = 'u32[]', space=smem, size = 0x4, offset = 0x4, fixed_abs, tag = 'smem constant byte address 0x4 - core index']
  #allocation1 [shape = 'u32[144,128]{1,0:T(1,128)}', space=vmem, size = 0x12000, scoped, tag = 'internal scratch']
  %s0 = inlined_call_operand.vmem [shape: f32[16,128], index: 0, kind: input, shape index: {}]
  %s1 = inlined_call_operand.vmem [shape: f32[16,16], index: 1, kind: input, shape index: {}]
  %s2 = inlined_call_operand.vmem [shape: f32[1,128], index: 2, kind: input, shape index: {}]
  %s3 = inlined_call_operand.vmem [shape: bf16[128,176], index: 3, kind: input, shape index: {}]
  %s4 = inlined_call_operand.vmem [shape: f32[1,64], index: 4, kind: input, shape index: {}]
  %s5 = inlined_call_operand.vmem [shape: bf16[64,128], index: 5, kind: input, shape index: {}]
  %s6 = inlined_call_operand.vmem [shape: bf16[64,128], index: 6, kind: input, shape index: {}]
  %s7 = inlined_call_operand.vmem [shape: f32[1,128], index: 7, kind: input, shape index: {}]
  %s8 = inlined_call_operand.hbm [shape: bf16[128,512], index: 8, kind: input, shape index: {}]
  %s9 = inlined_call_operand.vmem [shape: bf16[256,128], index: 9, kind: input, shape index: {}]
  %s10 = inlined_call_operand.hbm [shape: f32[16,128], index: 10, kind: output, shape index: {}]
  %s11 = sld [smem:[#allocation0]]
  $region54: #{tpu_custom_call.1} parent=0
    _
  %s13 = ssub.s32 1, %s11
  %s14 = scalar_select 0, %s13, %s11
  $region1: #{tpu_custom_call.1} parent=0
    #allocation2 [shape = 'u8[131072]{0}', space=vmem, size = 0x20000, scoped, tag = 'input window, operand 8, single buffered']
    #allocation3 [shape = 's32[1]{0}', space=sflag, size = 0x4, scoped, tag = 'scoped memory for tpu_custom_call.1']
    #allocation4 [shape = 's32[1]{0}', space=sflag, size = 0x4, scoped, tag = 'scoped memory for tpu_custom_call.1']
    #allocation5 [shape = 'u8[8192]{0}', space=vmem, size = 0x2000, scoped, tag = 'output window, operand 0, single buffered']
    %15 = vsyncpa [#allocation3], 0
    %16 = vsyncpa [#allocation4], 0
    // Predicated region
    $region2: #{tpu_custom_call.1} parent=1 // pred_check
      _
    $region3: #{tpu_custom_call.1} parent=1 // pred_check_branch
      %18 = sbr.rel (0) target = $region5
    $region4: #{tpu_custom_call.1} parent=1 // pred_region
      _
    $region5: #{tpu_custom_call.1} parent=1 // pred_fallthru
      _
    // Predicated region
    $region6: #{tpu_custom_call.1} parent=1 // pred_check
      _
    $region7: #{tpu_custom_call.1} parent=1 // pred_check_branch
      %20 = sbr.rel (0) target = $region9
    $region8: #{tpu_custom_call.1} parent=1 // pred_region
      _
    $region9: #{tpu_custom_call.1} parent=1 // pred_fallthru
      _
    // Predicated region
    $region10: #{tpu_custom_call.1} parent=1 // pred_check
      _
    $region11: #{tpu_custom_call.1} parent=1 // pred_check_branch
      %22 = sbr.rel (0) target = $region13
    $region12: #{tpu_custom_call.1} parent=1 // pred_region
      _
    $region13: #{tpu_custom_call.1} parent=1 // pred_fallthru
      _
    // Predicated region
    $region14: #{tpu_custom_call.1} parent=1 // pred_check
      _
    $region15: #{tpu_custom_call.1} parent=1 // pred_check_branch
      %24 = sbr.rel (0) target = $region17
    $region16: #{tpu_custom_call.1} parent=1 // pred_region
      _
    $region17: #{tpu_custom_call.1} parent=1 // pred_fallthru
      _
    // Predicated region
    $region18: #{tpu_custom_call.1} parent=1 // pred_check
      _
    $region19: #{tpu_custom_call.1} parent=1 // pred_check_branch
      %26 = sbr.rel (0) target = $region21
    $region20: #{tpu_custom_call.1} parent=1 // pred_region
      _
    $region21: #{tpu_custom_call.1} parent=1 // pred_fallthru
      _
    // Predicated region
    $region22: #{tpu_custom_call.1} parent=1 // pred_check
      _
    $region23: #{tpu_custom_call.1} parent=1 // pred_check_branch
      %28 = sbr.rel (0) target = $region25
    $region24: #{tpu_custom_call.1} parent=1 // pred_region
      _
    $region25: #{tpu_custom_call.1} parent=1 // pred_fallthru
      _
    // Predicated region
    $region26: #{tpu_custom_call.1} parent=1 // pred_check
      _
    $region27: #{tpu_custom_call.1} parent=1 // pred_check_branch
      %30 = sbr.rel (0) target = $region29
    $region28: #{tpu_custom_call.1} parent=1 // pred_region
      _
    $region29: #{tpu_custom_call.1} parent=1 // pred_fallthru
      _
    // Predicated region
    $region30: #{tpu_custom_call.1} parent=1 // pred_check
      _
    $region31: #{tpu_custom_call.1} parent=1 // pred_check_branch
      %32 = sbr.rel (0) target = $region33
    $region32: #{tpu_custom_call.1} parent=1 // pred_region
      _
    $region33: #{tpu_custom_call.1} parent=1 // pred_fallthru
      _
    // Predicated region
    $region34: #{tpu_custom_call.1} parent=1 // pred_check
      _
    $region35: #{tpu_custom_call.1} parent=1 // pred_check_branch
      %34 = sbr.rel (0) target = $region37
    $region36: #{tpu_custom_call.1} parent=1 // pred_region
      %s36 = ssub.s32 4096, 4096
      %37 = vsyncadd [#allocation3], %s36
      %s38 = sshll.u32 [#allocation2], 4
      %s39 = int_to_ptr.vmem [resolvable:$true] %s38
      %44 = dma.hbm_to_vmem [thread:$0]  %s8, 4096, %s39, [#allocation3], 256, 256, 16
    $region37: #{tpu_custom_call.1} parent=1 // pred_fallthru
      _
    // Predicated region
    $region38: #{tpu_custom_call.1} parent=1 // pred_check
      _
    $region39: #{tpu_custom_call.1} parent=1 // pred_check_branch
      %46 = sbr.rel (0) target = $region41
    $region40: #{tpu_custom_call.1} parent=1 // pred_region
      _
    $region41: #{tpu_custom_call.1} parent=1 // pred_fallthru
      _
    // Predicated region
    $region42: #{tpu_custom_call.1} parent=1 // pred_check
      _
    $region43: #{tpu_custom_call.1} parent=1 // pred_check_branch
      %48 = sbr.rel (0) target = $region45
    $region44: #{tpu_custom_call.1} parent=1 // pred_region
      %49 = dma.done [#allocation3], 4096
    $region45: #{tpu_custom_call.1} parent=1 // pred_fallthru
      _
    %v51 = vld [vmem:[%s0] sm:$0xff]
    %v52 = vld [vmem:[%s0 + $0x8] sm:$0xff]
    %v53 = vld [vmem:[%s1] sm:$0xff]
    %v54 = vld [vmem:[%s1 + $0x8] sm:$0xff]
    %v55 = vlaneseq
    %v56 = vshrl.u32 %v55, 7
    %v57 = vadd.s32 %v56, 8
    %v58 = vlaneseq
    %v59 = vand.u32 %v58, 127
    %v60 = vshra.s32 %v56, 3
    %v61 = vshra.s32 %v57, 3
    %v62 = vshra.s32 %v59, 3
    %vm63 = vcmp.eq.s32.totalorder %v60, %v62
    %vm64 = vcmp.eq.s32.totalorder %v61, %v62
    %vm65 = vcmp.le.s32.totalorder %v59, %v56
    %vm66 = vcmp.le.s32.totalorder %v59, %v57
    %vm67 = vmand %vm63, %vm65
    %vm68 = vmand %vm64, %vm66
    %v69 = vsel %vm67, 0.0, -1e+30
    %v70 = vsel %vm68, 0.0, -1e+30
    %v71 = vld [vmem:[%s2] sm:$0x1]
    %v72 = vmul.f32 %v51, %v51
    %v73 = vmul.f32 %v52, %v52
    %74 = vadd.xlane.f32.xlu0 %v72
    %v75 = vpop.xlane.xlu0 %74
    %76 = vadd.xlane.f32.xlu0 %v73
    %v77 = vpop.xlane.xlu0 %76
    %v78 = vrcp.pop 128.0
    %v79 = vmul.f32 %v75, %v78
    %v80 = vmul.f32 %v77, %v78
    %v81 = vadd.f32 %v79, 1e-06
    %v82 = vadd.f32 %v80, 1e-06
    %v83 = vrsqrt.pop %v81
    %v84 = vrsqrt.pop %v82
    %v85 = vmul.f32 %v51, %v83
    %v86 = vmul.f32 %v52, %v84
    %v88 = vlaneseq
    %v89 = vshrl.u32 %v88, 7
    %v90 = vsub.s32 0, %v89
    %v91 = vrot.slane %v71, %v90
    %v93 = vmul.f32 %v85, %v91
    %v94 = vmul.f32 %v86, %v91
    %v95 = vpack.c.bf16 %v94, %v93
    %v96 = vld [vmem:[%s3] sm:$0xff]
    %v97 = vld [vmem:[%s3 + $0x8] sm:$0xff]
    %v98 = vld [vmem:[%s3 + $0x10] sm:$0xff]
    %v99 = vld [vmem:[%s3 + $0x18] sm:$0xff]
    %v100 = vld [vmem:[%s3 + $0x20] sm:$0xff]
    %v101 = vld [vmem:[%s3 + $0x28] sm:$0xff]
    %v102 = vld [vmem:[%s3 + $0x30] sm:$0xff]
    %v103 = vld [vmem:[%s3 + $0x38] sm:$0xff]
    %v104 = vld [vmem:[%s3 + $0x40] sm:$0xff]
    %v105 = vld [vmem:[%s3 + $0x48] sm:$0xff]
    %v106 = vld [vmem:[%s3 + $0x50] sm:$0xff]
    %v107 = vld [vmem:[%s3 + $0x58] sm:$0xff]
    %v108 = vld [vmem:[%s3 + $0x60] sm:$0xff]
    %v109 = vld [vmem:[%s3 + $0x68] sm:$0xff]
    %v110 = vld [vmem:[%s3 + $0x70] sm:$0xff]
    %v111 = vld [vmem:[%s3 + $0x78] sm:$0xff]
    %v128 = vunpack.c.l.b16 %v96
    %v129 = vunpack.c.h.b16 %v96
    %v130 = vunpack.c.l.b16 %v97
    %v131 = vunpack.c.h.b16 %v97
    %v132 = vunpack.c.l.b16 %v98
    %v133 = vunpack.c.h.b16 %v98
    %v134 = vunpack.c.l.b16 %v99
    %v135 = vunpack.c.h.b16 %v99
    %v136 = vunpack.c.l.b16 %v100
    %v137 = vunpack.c.h.b16 %v100
    %v138 = vunpack.c.l.b16 %v101
    %v139 = vunpack.c.h.b16 %v101
    %v140 = vunpack.c.l.b16 %v102
    %v141 = vunpack.c.h.b16 %v102
    %v142 = vunpack.c.l.b16 %v103
    %v143 = vunpack.c.h.b16 %v103
    %v144 = vunpack.c.l.b16 %v104
    %v145 = vunpack.c.h.b16 %v104
    %v146 = vunpack.c.l.b16 %v105
    %v147 = vunpack.c.h.b16 %v105
    %v148 = vunpack.c.l.b16 %v106
    %v149 = vunpack.c.h.b16 %v106
    %v150 = vunpack.c.l.b16 %v107
    %v151 = vunpack.c.h.b16 %v107
    %v152 = vunpack.c.l.b16 %v108
    %v153 = vunpack.c.h.b16 %v108
    %v154 = vunpack.c.l.b16 %v109
    %v155 = vunpack.c.h.b16 %v109
    %v156 = vunpack.c.l.b16 %v110
    %v157 = vunpack.c.h.b16 %v110
    %v158 = vunpack.c.l.b16 %v111
    %v159 = vunpack.c.h.b16 %v111
    %v160 = vpack.c.b16 %v130, %v128
    %v161 = vpack.c.b16 %v131, %v129
    %v162 = vpack.c.b16 %v134, %v132
    %v163 = vpack.c.b16 %v135, %v133
    %v164 = vpack.c.b16 %v138, %v136
    %v165 = vpack.c.b16 %v139, %v137
    %v166 = vpack.c.b16 %v142, %v140
    %v167 = vpack.c.b16 %v143, %v141
    %v168 = vpack.c.b16 %v146, %v144
    %v169 = vpack.c.b16 %v147, %v145
    %v170 = vpack.c.b16 %v150, %v148
    %v171 = vpack.c.b16 %v151, %v149
    %v172 = vpack.c.b16 %v154, %v152
    %v173 = vpack.c.b16 %v155, %v153
    %v174 = vpack.c.b16 %v158, %v156
    %v175 = vpack.c.b16 %v159, %v157
    %192 = vmatprep.subr.bf16.mxu0 %v161
    %193 = vmatpush1.bf16.msra.mxu0 %v160
    %194 = vmatprep.subr.bf16.mxu0 %v163
    %195 = vmatpush1.bf16.msra.mxu0 %v162
    %196 = vmatprep.subr.bf16.mxu0 %v165
    %197 = vmatpush1.bf16.msra.mxu0 %v164
    %198 = vmatprep.subr.bf16.mxu0 %v167
    %199 = vmatpush1.bf16.msra.mxu0 %v166
    %200 = vmatprep.subr.bf16.mxu0 %v169
    %201 = vmatpush1.bf16.msra.mxu0 %v168
    %202 = vmatprep.subr.bf16.mxu0 %v171
    %203 = vmatpush1.bf16.msra.mxu0 %v170
    %204 = vmatprep.subr.bf16.mxu0 %v173
    %205 = vmatpush1.bf16.msra.mxu0 %v172
    %206 = vmatprep.subr.bf16.mxu0 %v175
    %207 = vmatpush1.bf16.msra.mxu0 %v174
    %208 = vmatprep.subr.bf16.mxu0 0
    %209 = vmatpush1.bf16.msra.mxu0 0
    %210 = vmatprep.subr.bf16.mxu0 0
    %211 = vmatpush1.bf16.msra.mxu0 0
    %212 = vmatprep.subr.bf16.mxu0 0
    %213 = vmatpush1.bf16.msra.mxu0 0
    %214 = vmatprep.subr.bf16.mxu0 0
    %215 = vmatpush1.bf16.msra.mxu0 0
    %216 = vmatprep.subr.bf16.mxu0 0
    %217 = vmatpush1.bf16.msra.mxu0 0
    %218 = vmatprep.subr.bf16.mxu0 0
    %219 = vmatpush1.bf16.msra.mxu0 0
    %220 = vmatprep.subr.bf16.mxu0 0
    %221 = vmatpush1.bf16.msra.mxu0 0
    %222 = vmatprep.subr.bf16.mxu0 0
    %223 = vmatpush1.bf16.msra.mxu0 0
    %224 = vmatprep.mubr.bf16.mxu0 0
    %225 = vmatmul.mubr.bf16.gmra.mrb[0].mxu0 %v95
    %v226 = vpop.f32.mrb[0].mxu0
    %v227 = vadd.f32 0.0, %v226
    %v228 = vpop.f32.mrb[0].mxu0
    %v229 = vadd.f32 0.0, %v228
    %v230 = vpop.f32.mrb[0].mxu0
    %v231 = vadd.f32 0.0, %v230
    %v232 = vpop.f32.mrb[0].mxu0
    %v233 = vadd.f32 0.0, %v232
    %234 = vdwg.mxu0
    %v235 = vld [vmem:[%s4] sm:$0x1]
    %v236 = vmul.f32 %v227, %v227
    %v237 = vmul.f32 %v231, %v231
    %vm238 = vcmask 523264
    %v239 = vsel %vm238, %v236, 0.0
    %240 = vadd.xlane.f32.xlu0 %v239
    %v241 = vpop.xlane.xlu0 %240
    %v242 = vsel %vm238, %v237, 0.0
    %243 = vadd.xlane.f32.xlu0 %v242
    %v244 = vpop.xlane.xlu0 %243
    %v245 = vrcp.pop 64.0
    %v246 = vmul.f32 %v241, %v245
    %v247 = vmul.f32 %v244, %v245
    %v248 = vadd.f32 %v246, 1e-06
    %v249 = vadd.f32 %v247, 1e-06
    %v250 = vrsqrt.pop %v248
    %v251 = vrsqrt.pop %v249
    %v252 = vmul.f32 %v227, %v250
    %v253 = vmul.f32 %v231, %v251
    %v255 = vlaneseq
    %v256 = vshrl.u32 %v255, 7
    %v257 = vsub.s32 0, %v256
    %v258 = vrot.slane %v235, %v257
    %v260 = vmul.f32 %v252, %v258
    %v261 = vmul.f32 %v253, %v258
    %264 = vrot.lane.b32.xlu0 %v53, 32
    %v265 = vpop.permute.xlu0 %264
    %266 = vrot.lane.b32.xlu0 %v54, 32
    %v267 = vpop.permute.xlu0 %266
    %v270 = vmul.f32 %v229, %v265
    %v271 = vmul.f32 %v233, %v267
    %274 = vrot.lane.b32.xlu0 %v270, 120
    %v275 = vpop.permute.xlu0 %274
    %276 = vrot.lane.b32.xlu0 %v271, 120
    %v277 = vpop.permute.xlu0 %276
    %v280 = vsub.f32 %v270, %v275
    %v281 = vsub.f32 %v271, %v277
    %282 = vrot.lane.b32.xlu0 %v53, 40
    %v283 = vpop.permute.xlu0 %282
    %284 = vrot.lane.b32.xlu0 %v54, 40
    %v285 = vpop.permute.xlu0 %284
    %v288 = vmul.f32 %v229, %v283
    %v289 = vmul.f32 %v233, %v285
    %290 = vrot.lane.b32.xlu0 %v53, 24
    %v291 = vpop.permute.xlu0 %290
    %292 = vrot.lane.b32.xlu0 %v54, 24
    %v293 = vpop.permute.xlu0 %292
    %v296 = vmul.f32 %v229, %v291
    %v297 = vmul.f32 %v233, %v293
    %300 = vrot.lane.b32.xlu0 %v296, 8
    %v301 = vpop.permute.xlu0 %300
    %302 = vrot.lane.b32.xlu0 %v297, 8
    %v303 = vpop.permute.xlu0 %302
    %v306 = vadd.f32 %v288, %v301
    %v307 = vadd.f32 %v289, %v303
    %310 = vrot.lane.b32.xlu0 %v280, 96
    %v311 = vpop.permute.xlu0 %310
    %312 = vrot.lane.b32.xlu0 %v281, 96
    %v313 = vpop.permute.xlu0 %312
    %318 = vrot.lane.b32.xlu0 %v306, 96
    %v319 = vpop.permute.xlu0 %318
    %320 = vrot.lane.b32.xlu0 %v307, 96
    %v321 = vpop.permute.xlu0 %320
    %vm324 = vcmask 64512
    %v325 = vsel %vm324, %v311, %v319
    %v326 = vsel %vm324, %v313, %v321
    %v327 = vpack.c.bf16 %v261, %v260
    %v328 = vld [vmem:[%s5] sm:$0xf]
    %v329 = vld [vmem:[%s5 + $0x4] sm:$0xf]
    %v330 = vld [vmem:[%s5 + $0x8] sm:$0xf]
    %v331 = vld [vmem:[%s5 + $0xc] sm:$0xf]
    %v332 = vld [vmem:[%s5 + $0x10] sm:$0xf]
    %v333 = vld [vmem:[%s5 + $0x14] sm:$0xf]
    %v334 = vld [vmem:[%s5 + $0x18] sm:$0xf]
    %v335 = vld [vmem:[%s5 + $0x1c] sm:$0xf]
    %v344 = vunpack.c.l.b16 %v328
    %v345 = vunpack.c.l.b16 %v329
    %v346 = vunpack.c.l.b16 %v330
    %v347 = vunpack.c.l.b16 %v331
    %v348 = vunpack.c.l.b16 %v332
    %v349 = vunpack.c.l.b16 %v333
    %v350 = vunpack.c.l.b16 %v334
    %v351 = vunpack.c.l.b16 %v335
    %v352 = vpack.c.b16 %v345, %v344
    %v353 = vpack.c.b16 %v347, %v346
    %v354 = vpack.c.b16 %v349, %v348
    %v355 = vpack.c.b16 %v351, %v350
    %v361 = vsel %vm238, %v327, 0
    %363 = vmatprep.subr.bf16.mxu0 0
    %364 = vmatpush1.bf16.msra.mxu0 %v352
    %365 = vmatprep.subr.bf16.mxu0 0
    %366 = vmatpush1.bf16.msra.mxu0 %v353
    %367 = vmatprep.subr.bf16.mxu0 0
    %368 = vmatpush1.bf16.msra.mxu0 %v354
    %369 = vmatprep.subr.bf16.mxu0 0
    %370 = vmatpush1.bf16.msra.mxu0 %v355
    %371 = vmatprep.subr.bf16.mxu0 0
    %372 = vmatpush1.bf16.msra.mxu0 0
    %373 = vmatprep.subr.bf16.mxu0 0
    %374 = vmatpush1.bf16.msra.mxu0 0
    %375 = vmatprep.subr.bf16.mxu0 0
    %376 = vmatpush1.bf16.msra.mxu0 0
    %377 = vmatprep.subr.bf16.mxu0 0
    %378 = vmatpush1.bf16.msra.mxu0 0
    %379 = vmatprep.subr.bf16.mxu0 0
    %380 = vmatpush1.bf16.msra.mxu0 0
    %381 = vmatprep.subr.bf16.mxu0 0
    %382 = vmatpush1.bf16.msra.mxu0 0
    %383 = vmatprep.subr.bf16.mxu0 0
    %384 = vmatpush1.bf16.msra.mxu0 0
    %385 = vmatprep.subr.bf16.mxu0 0
    %386 = vmatpush1.bf16.msra.mxu0 0
    %387 = vmatprep.subr.bf16.mxu0 0
    %388 = vmatpush1.bf16.msra.mxu0 0
    %389 = vmatprep.subr.bf16.mxu0 0
    %390 = vmatpush1.bf16.msra.mxu0 0
    %391 = vmatprep.subr.bf16.mxu0 0
    %392 = vmatpush1.bf16.msra.mxu0 0
    %393 = vmatprep.subr.bf16.mxu0 0
    %394 = vmatpush1.bf16.msra.mxu0 0
    %395 = vmatprep.mubr.bf16.mxu0 0
    %396 = vmatmul.mubr.bf16.gmra.mrb[0].mxu0 %v361
    %v397 = vpop.f32.mrb[0].mxu0
    %v398 = vadd.f32 0.0, %v397
    %v399 = vpop.f32.mrb[0].mxu0
    %v400 = vpop.f32.mrb[0].mxu0
    %v401 = vadd.f32 0.0, %v400
    %v402 = vpop.f32.mrb[0].mxu0
    %403 = vdwg.mxu0
    %v404 = vmul.f32 %v229, %v53
    %v405 = vmul.f32 %v233, %v54
    %408 = vrot.lane.b32.xlu0 %v404, 120
    %v409 = vpop.permute.xlu0 %408
    %410 = vrot.lane.b32.xlu0 %v405, 120
    %v411 = vpop.permute.xlu0 %410
    %v414 = vsub.f32 %v404, %v409
    %v415 = vsub.f32 %v405, %v411
    %416 = vrot.lane.b32.xlu0 %v53, 8
    %v417 = vpop.permute.xlu0 %416
    %418 = vrot.lane.b32.xlu0 %v54, 8
    %v419 = vpop.permute.xlu0 %418
    %v422 = vmul.f32 %v229, %v417
    %v423 = vmul.f32 %v233, %v419
    %424 = vrot.lane.b32.xlu0 %v53, 120
    %v425 = vpop.permute.xlu0 %424
    %426 = vrot.lane.b32.xlu0 %v54, 120
    %v427 = vpop.permute.xlu0 %426
    %v430 = vmul.f32 %v229, %v425
    %v431 = vmul.f32 %v233, %v427
    %434 = vrot.lane.b32.xlu0 %v430, 8
    %v435 = vpop.permute.xlu0 %434
    %436 = vrot.lane.b32.xlu0 %v431, 8
    %v437 = vpop.permute.xlu0 %436
    %v440 = vadd.f32 %v422, %v435
    %v441 = vadd.f32 %v423, %v437
    %v442 = vsel %vm324, %v414, %v440
    %v443 = vsel %vm324, %v415, %v441
    %446 = vrot.lane.b32.xlu0 %v227, 64
    %v447 = vpop.permute.xlu0 %446
    %448 = vrot.lane.b32.xlu0 %v231, 64
    %v449 = vpop.permute.xlu0 %448
    %454 = vrot.lane.b32.xlu0 %v442, 32
    %v455 = vpop.permute.xlu0 %454
    %456 = vrot.lane.b32.xlu0 %v443, 32
    %v457 = vpop.permute.xlu0 %456
    %vm460 = vcmask 261120
    %v461 = vsel %vm460, %v447, %v455
    %v462 = vsel %vm460, %v449, %v457
    %465 = vrot.lane.b32.xlu0 %v325, 32
    %v466 = vpop.permute.xlu0 %465
    %467 = vrot.lane.b32.xlu0 %v326, 32
    %v468 = vpop.permute.xlu0 %467
    %v471 = vsel %vm460, %v398, %v466
    %v472 = vsel %vm460, %v401, %v468
    %vm473 = vcmask 392192
    %v475 = vsel %vm473, %v461, 0
    %v478 = vsel %vm473, %v462, 0
    %v481 = vsel %vm473, %v471, 0
    %v484 = vsel %vm473, %v472, 0
    %486 = vmatprep.subr.mxu0 0.0
    %487 = vmatpush1.xpose.msra.mxu0 %v481
    %488 = vmatprep.subr.mxu0 0.0
    %489 = vmatpush1.xpose.msra.mxu0 %v484
    %490 = vmatprep.subr.mxu0 0.0
    %491 = vmatpush1.xpose.msra.mxu0 0.0
    %492 = vmatprep.subr.mxu0 0.0
    %493 = vmatpush1.xpose.msra.mxu0 0.0
    %494 = vmatprep.subr.mxu0 0.0
    %495 = vmatpush1.xpose.msra.mxu0 0.0
    %496 = vmatprep.subr.mxu0 0.0
    %497 = vmatpush1.xpose.msra.mxu0 0.0
    %498 = vmatprep.subr.mxu0 0.0
    %499 = vmatpush1.xpose.msra.mxu0 0.0
    %500 = vmatprep.subr.mxu0 0.0
    %501 = vmatpush1.xpose.msra.mxu0 0.0
    %502 = vmatprep.subr.mxu0 0.0
    %503 = vmatpush1.xpose.msra.mxu0 0.0
    %504 = vmatprep.subr.mxu0 0.0
    %505 = vmatpush1.xpose.msra.mxu0 0.0
    %506 = vmatprep.subr.mxu0 0.0
    %507 = vmatpush1.xpose.msra.mxu0 0.0
    %508 = vmatprep.subr.mxu0 0.0
    %509 = vmatpush1.xpose.msra.mxu0 0.0
    %510 = vmatprep.subr.mxu0 0.0
    %511 = vmatpush1.xpose.msra.mxu0 0.0
    %512 = vmatprep.subr.mxu0 0.0
    %513 = vmatpush1.xpose.msra.mxu0 0.0
    %514 = vmatprep.subr.mxu0 0.0
    %515 = vmatpush1.xpose.msra.mxu0 0.0
    %516 = vmatprep.subr.mxu0 0.0
    %517 = vmatpush1.xpose.msra.mxu0 0.0
    %518 = vmatprep.subr.mxu0 0.0
    %519 = vmatpush1.xpose.msra.mxu0 0.0
    %520 = vmatprep.subr.mxu0 0.0
    %521 = vmatpush1.xpose.msra.mxu0 0.0
    %522 = vmatprep.subr.mxu0 0.0
    %523 = vmatpush1.xpose.msra.mxu0 0.0
    %524 = vmatprep.subr.mxu0 0.0
    %525 = vmatpush1.xpose.msra.mxu0 0.0
    %526 = vmatprep.subr.mxu0 0.0
    %527 = vmatpush1.xpose.msra.mxu0 0.0
    %528 = vmatprep.subr.mxu0 0.0
    %529 = vmatpush1.xpose.msra.mxu0 0.0
    %530 = vmatprep.subr.mxu0 0.0
    %531 = vmatpush1.xpose.msra.mxu0 0.0
    %532 = vmatprep.subr.mxu0 0.0
    %533 = vmatpush1.xpose.msra.mxu0 0.0
    %534 = vmatprep.subr.mxu0 0.0
    %535 = vmatpush1.xpose.msra.mxu0 0.0
    %536 = vmatprep.subr.mxu0 0.0
    %537 = vmatpush1.xpose.msra.mxu0 0.0
    %538 = vmatprep.subr.mxu0 0.0
    %539 = vmatpush1.xpose.msra.mxu0 0.0
    %540 = vmatprep.subr.mxu0 0.0
    %541 = vmatpush1.xpose.msra.mxu0 0.0
    %542 = vmatprep.subr.mxu0 0.0
    %543 = vmatpush1.xpose.msra.mxu0 0.0
    %544 = vmatprep.subr.mxu0 0.0
    %545 = vmatpush1.xpose.msra.mxu0 0.0
    %546 = vmatprep.subr.mxu0 0.0
    %547 = vmatpush1.xpose.msra.mxu0 0.0
    %548 = vmatprep.subr.mxu0 0.0
    %549 = vmatpush1.xpose.msra.mxu0 0.0
    %550 = vmatprep.mubr.f32.mxu0 0.0
    %551 = vmatmul.mubr.f32.gmra.mrb[0].mxu0 %v475
    %v552 = vpop.f32.mrb[0].mxu0
    %v553 = vadd.f32 0.0, %v552
    %v554 = vpop.f32.mrb[0].mxu0
    %555 = vmatprep.mubr.f32.mxu0 0.0
    %556 = vmatmul.mubr.f32.gmra.mrb[0].mxu0 %v478
    %v557 = vpop.f32.mrb[0].mxu0
    %v558 = vadd.f32 0.0, %v557
    %v559 = vpop.f32.mrb[0].mxu0
    %560 = vdwg.mxu0
    %v561 = vmul.f32 %v553, 0.14433756
    %v562 = vmul.f32 %v558, 0.14433756
    %v563 = vadd.f32 %v561, %v69
    %v564 = vadd.f32 %v562, %v70
    %vm565 = vcmask 130048
    %v566 = vsel %vm565, %v563, -inf
    %567 = vmax.xlane.f32.xlu0 %v566
    %v568 = vpop.xlane.xlu0 %567
    %v569 = vsel %vm565, %v564, -inf
    %570 = vmax.xlane.f32.xlu0 %v569
    %v571 = vpop.xlane.xlu0 %570
    %v572 = vsub.f32 %v563, %v568
    %v573 = vsub.f32 %v564, %v571
    %v574 = vmul.f32 %v572, 1.442695
    %v575 = vpow.pop %v574
    %v576 = vmul.f32 %v573, 1.442695
    %v577 = vpow.pop %v576
    %v578 = vsel %vm565, %v575, 0.0
    %579 = vadd.xlane.f32.xlu0 %v578
    %v580 = vpop.xlane.xlu0 %579
    %v581 = vsel %vm565, %v577, 0.0
    %582 = vadd.xlane.f32.xlu0 %v581
    %v583 = vpop.xlane.xlu0 %582
    %v584 = vrcp.pop %v580
    %v585 = vrcp.pop %v583
    %v586 = vmul.f32 %v575, %v584
    %v587 = vmul.f32 %v577, %v585
    %590 = vrot.lane.b32.xlu0 %v398, 96
    %v591 = vpop.permute.xlu0 %590
    %592 = vrot.lane.b32.xlu0 %v401, 96
    %v593 = vpop.permute.xlu0 %592
    %v597 = vsel %vm565, %v586, 0
    %v600 = vsel %vm565, %v587, 0
    %602 = vmatprep.subr.mxu0 0.0
    %603 = vmatpush1.msra.mxu0 %v591
    %604 = vmatprep.subr.mxu0 0.0
    %605 = vmatpush1.msra.mxu0 %v593
    %606 = vmatprep.subr.mxu0 0.0
    %607 = vmatpush1.msra.mxu0 0.0
    %608 = vmatprep.subr.mxu0 0.0
    %609 = vmatpush1.msra.mxu0 0.0
    %610 = vmatprep.subr.mxu0 0.0
    %611 = vmatpush1.msra.mxu0 0.0
    %612 = vmatprep.subr.mxu0 0.0
    %613 = vmatpush1.msra.mxu0 0.0
    %614 = vmatprep.subr.mxu0 0.0
    %615 = vmatpush1.msra.mxu0 0.0
    %616 = vmatprep.subr.mxu0 0.0
    %617 = vmatpush1.msra.mxu0 0.0
    %618 = vmatprep.subr.mxu0 0.0
    %619 = vmatpush1.msra.mxu0 0.0
    %620 = vmatprep.subr.mxu0 0.0
    %621 = vmatpush1.msra.mxu0 0.0
    %622 = vmatprep.subr.mxu0 0.0
    %623 = vmatpush1.msra.mxu0 0.0
    %624 = vmatprep.subr.mxu0 0.0
    %625 = vmatpush1.msra.mxu0 0.0
    %626 = vmatprep.subr.mxu0 0.0
    %627 = vmatpush1.msra.mxu0 0.0
    %628 = vmatprep.subr.mxu0 0.0
    %629 = vmatpush1.msra.mxu0 0.0
    %630 = vmatprep.subr.mxu0 0.0
    %631 = vmatpush1.msra.mxu0 0.0
    %632 = vmatprep.subr.mxu0 0.0
    %633 = vmatpush1.msra.mxu0 0.0
    %634 = vmatprep.subr.mxu0 0.0
    %635 = vmatpush1.msra.mxu0 0.0
    %636 = vmatprep.subr.mxu0 0.0
    %637 = vmatpush1.msra.mxu0 0.0
    %638 = vmatprep.subr.mxu0 0.0
    %639 = vmatpush1.msra.mxu0 0.0
    %640 = vmatprep.subr.mxu0 0.0
    %641 = vmatpush1.msra.mxu0 0.0
    %642 = vmatprep.subr.mxu0 0.0
    %643 = vmatpush1.msra.mxu0 0.0
    %644 = vmatprep.subr.mxu0 0.0
    %645 = vmatpush1.msra.mxu0 0.0
    %646 = vmatprep.subr.mxu0 0.0
    %647 = vmatpush1.msra.mxu0 0.0
    %648 = vmatprep.subr.mxu0 0.0
    %649 = vmatpush1.msra.mxu0 0.0
    %650 = vmatprep.subr.mxu0 0.0
    %651 = vmatpush1.msra.mxu0 0.0
    %652 = vmatprep.subr.mxu0 0.0
    %653 = vmatpush1.msra.mxu0 0.0
    %654 = vmatprep.subr.mxu0 0.0
    %655 = vmatpush1.msra.mxu0 0.0
    %656 = vmatprep.subr.mxu0 0.0
    %657 = vmatpush1.msra.mxu0 0.0
    %658 = vmatprep.subr.mxu0 0.0
    %659 = vmatpush1.msra.mxu0 0.0
    %660 = vmatprep.subr.mxu0 0.0
    %661 = vmatpush1.msra.mxu0 0.0
    %662 = vmatprep.subr.mxu0 0.0
    %663 = vmatpush1.msra.mxu0 0.0
    %664 = vmatprep.subr.mxu0 0.0
    %665 = vmatpush1.msra.mxu0 0.0
    %666 = vmatprep.mubr.f32.mxu0 0.0
    %667 = vmatmul.mubr.f32.gmra.mrb[0].mxu0 %v597
    %v668 = vpop.f32.mrb[0].mxu0
    %v669 = vadd.f32 0.0, %v668
    %v670 = vpop.f32.mrb[0].mxu0
    %671 = vmatprep.mubr.f32.mxu0 0.0
    %672 = vmatmul.mubr.f32.gmra.mrb[0].mxu0 %v600
    %v673 = vpop.f32.mrb[0].mxu0
    %v674 = vadd.f32 0.0, %v673
    %v675 = vpop.f32.mrb[0].mxu0
    %676 = vdwg.mxu0
    %677 = vrot.lane.b32.xlu0 %v53, 16
    %v678 = vpop.permute.xlu0 %677
    %679 = vrot.lane.b32.xlu0 %v54, 16
    %v680 = vpop.permute.xlu0 %679
    %v683 = vmul.f32 %v229, %v678
    %v684 = vmul.f32 %v233, %v680
    %687 = vrot.lane.b32.xlu0 %v683, 120
    %v688 = vpop.permute.xlu0 %687
    %689 = vrot.lane.b32.xlu0 %v684, 120
    %v690 = vpop.permute.xlu0 %689
    %v693 = vsub.f32 %v683, %v688
    %v694 = vsub.f32 %v684, %v690
    %697 = vrot.lane.b32.xlu0 %v422, 8
    %v698 = vpop.permute.xlu0 %697
    %699 = vrot.lane.b32.xlu0 %v423, 8
    %v700 = vpop.permute.xlu0 %699
    %v703 = vadd.f32 %v296, %v698
    %v704 = vadd.f32 %v297, %v700
    %707 = vrot.lane.b32.xlu0 %v693, 112
    %v708 = vpop.permute.xlu0 %707
    %709 = vrot.lane.b32.xlu0 %v694, 112
    %v710 = vpop.permute.xlu0 %709
    %715 = vrot.lane.b32.xlu0 %v703, 112
    %v716 = vpop.permute.xlu0 %715
    %717 = vrot.lane.b32.xlu0 %v704, 112
    %v718 = vpop.permute.xlu0 %717
    %v721 = vsel %vm324, %v708, %v716
    %v722 = vsel %vm324, %v710, %v718
    %723 = vrot.lane.b32.xlu0 %v227, 32
    %v724 = vpop.permute.xlu0 %723
    %725 = vrot.lane.b32.xlu0 %v231, 32
    %v726 = vpop.permute.xlu0 %725
    %731 = vrot.lane.b32.xlu0 %v721, 32
    %v732 = vpop.permute.xlu0 %731
    %733 = vrot.lane.b32.xlu0 %v722, 32
    %v734 = vpop.permute.xlu0 %733
    %v737 = vsel %vm460, %v724, %v732
    %v738 = vsel %vm460, %v726, %v734
    %739 = vrot.lane.b32.xlu0 %v398, 64
    %v740 = vpop.permute.xlu0 %739
    %741 = vrot.lane.b32.xlu0 %v401, 64
    %v742 = vpop.permute.xlu0 %741
    %v745 = vsel %vm460, %v740, %v466
    %v746 = vsel %vm460, %v742, %v468
    %v748 = vsel %vm473, %v737, 0
    %v751 = vsel %vm473, %v738, 0
    %v754 = vsel %vm473, %v745, 0
    %v757 = vsel %vm473, %v746, 0
    %759 = vmatprep.subr.mxu0 0.0
    %760 = vmatpush1.xpose.msra.mxu0 %v754
    %761 = vmatprep.subr.mxu0 0.0
    %762 = vmatpush1.xpose.msra.mxu0 %v757
    %763 = vmatprep.subr.mxu0 0.0
    %764 = vmatpush1.xpose.msra.mxu0 0.0
    %765 = vmatprep.subr.mxu0 0.0
    %766 = vmatpush1.xpose.msra.mxu0 0.0
    %767 = vmatprep.subr.mxu0 0.0
    %768 = vmatpush1.xpose.msra.mxu0 0.0
    %769 = vmatprep.subr.mxu0 0.0
    %770 = vmatpush1.xpose.msra.mxu0 0.0
    %771 = vmatprep.subr.mxu0 0.0
    %772 = vmatpush1.xpose.msra.mxu0 0.0
    %773 = vmatprep.subr.mxu0 0.0
    %774 = vmatpush1.xpose.msra.mxu0 0.0
    %775 = vmatprep.subr.mxu0 0.0
    %776 = vmatpush1.xpose.msra.mxu0 0.0
    %777 = vmatprep.subr.mxu0 0.0
    %778 = vmatpush1.xpose.msra.mxu0 0.0
    %779 = vmatprep.subr.mxu0 0.0
    %780 = vmatpush1.xpose.msra.mxu0 0.0
    %781 = vmatprep.subr.mxu0 0.0
    %782 = vmatpush1.xpose.msra.mxu0 0.0
    %783 = vmatprep.subr.mxu0 0.0
    %784 = vmatpush1.xpose.msra.mxu0 0.0
    %785 = vmatprep.subr.mxu0 0.0
    %786 = vmatpush1.xpose.msra.mxu0 0.0
    %787 = vmatprep.subr.mxu0 0.0
    %788 = vmatpush1.xpose.msra.mxu0 0.0
    %789 = vmatprep.subr.mxu0 0.0
    %790 = vmatpush1.xpose.msra.mxu0 0.0
    %791 = vmatprep.subr.mxu0 0.0
    %792 = vmatpush1.xpose.msra.mxu0 0.0
    %793 = vmatprep.subr.mxu0 0.0
    %794 = vmatpush1.xpose.msra.mxu0 0.0
    %795 = vmatprep.subr.mxu0 0.0
    %796 = vmatpush1.xpose.msra.mxu0 0.0
    %797 = vmatprep.subr.mxu0 0.0
    %798 = vmatpush1.xpose.msra.mxu0 0.0
    %799 = vmatprep.subr.mxu0 0.0
    %800 = vmatpush1.xpose.msra.mxu0 0.0
    %801 = vmatprep.subr.mxu0 0.0
    %802 = vmatpush1.xpose.msra.mxu0 0.0
    %803 = vmatprep.subr.mxu0 0.0
    %804 = vmatpush1.xpose.msra.mxu0 0.0
    %805 = vmatprep.subr.mxu0 0.0
    %806 = vmatpush1.xpose.msra.mxu0 0.0
    %807 = vmatprep.subr.mxu0 0.0
    %808 = vmatpush1.xpose.msra.mxu0 0.0
    %809 = vmatprep.subr.mxu0 0.0
    %810 = vmatpush1.xpose.msra.mxu0 0.0
    %811 = vmatprep.subr.mxu0 0.0
    %812 = vmatpush1.xpose.msra.mxu0 0.0
    %813 = vmatprep.subr.mxu0 0.0
    %814 = vmatpush1.xpose.msra.mxu0 0.0
    %815 = vmatprep.subr.mxu0 0.0
    %816 = vmatpush1.xpose.msra.mxu0 0.0
    %817 = vmatprep.subr.mxu0 0.0
    %818 = vmatpush1.xpose.msra.mxu0 0.0
    %819 = vmatprep.subr.mxu0 0.0
    %820 = vmatpush1.xpose.msra.mxu0 0.0
    %821 = vmatprep.subr.mxu0 0.0
    %822 = vmatpush1.xpose.msra.mxu0 0.0
    %823 = vmatprep.mubr.f32.mxu0 0.0
    %824 = vmatmul.mubr.f32.gmra.mrb[0].mxu0 %v748
    %v825 = vpop.f32.mrb[0].mxu0
    %v826 = vadd.f32 0.0, %v825
    %v827 = vpop.f32.mrb[0].mxu0
    %828 = vmatprep.mubr.f32.mxu0 0.0
    %829 = vmatmul.mubr.f32.gmra.mrb[0].mxu0 %v751
    %v830 = vpop.f32.mrb[0].mxu0
    %v831 = vadd.f32 0.0, %v830
    %v832 = vpop.f32.mrb[0].mxu0
    %833 = vdwg.mxu0
    %v834 = vmul.f32 %v826, 0.14433756
    %v835 = vmul.f32 %v831, 0.14433756
    %v836 = vadd.f32 %v834, %v69
    %v837 = vadd.f32 %v835, %v70
    %v838 = vsel %vm565, %v836, -inf
    %839 = vmax.xlane.f32.xlu0 %v838
    %v840 = vpop.xlane.xlu0 %839
    %v841 = vsel %vm565, %v837, -inf
    %842 = vmax.xlane.f32.xlu0 %v841
    %v843 = vpop.xlane.xlu0 %842
    %v844 = vsub.f32 %v836, %v840
    %v845 = vsub.f32 %v837, %v843
    %v846 = vmul.f32 %v844, 1.442695
    %v847 = vpow.pop %v846
    %v848 = vmul.f32 %v845, 1.442695
    %v849 = vpow.pop %v848
    %v850 = vsel %vm565, %v847, 0.0
    %851 = vadd.xlane.f32.xlu0 %v850
    %v852 = vpop.xlane.xlu0 %851
    %v853 = vsel %vm565, %v849, 0.0
    %854 = vadd.xlane.f32.xlu0 %v853
    %v855 = vpop.xlane.xlu0 %854
    %v856 = vrcp.pop %v852
    %v857 = vrcp.pop %v855
    %v858 = vmul.f32 %v847, %v856
    %v859 = vmul.f32 %v849, %v857
    %860 = vrot.lane.b32.xlu0 %v398, 32
    %v861 = vpop.permute.xlu0 %860
    %862 = vrot.lane.b32.xlu0 %v401, 32
    %v863 = vpop.permute.xlu0 %862
    %v867 = vsel %vm565, %v858, 0
    %v870 = vsel %vm565, %v859, 0
    %872 = vmatprep.subr.mxu0 0.0
    %873 = vmatpush1.msra.mxu0 %v861
    %874 = vmatprep.subr.mxu0 0.0
    %875 = vmatpush1.msra.mxu0 %v863
    %876 = vmatprep.subr.mxu0 0.0
    %877 = vmatpush1.msra.mxu0 0.0
    %878 = vmatprep.subr.mxu0 0.0
    %879 = vmatpush1.msra.mxu0 0.0
    %880 = vmatprep.subr.mxu0 0.0
    %881 = vmatpush1.msra.mxu0 0.0
    %882 = vmatprep.subr.mxu0 0.0
    %883 = vmatpush1.msra.mxu0 0.0
    %884 = vmatprep.subr.mxu0 0.0
    %885 = vmatpush1.msra.mxu0 0.0
    %886 = vmatprep.subr.mxu0 0.0
    %887 = vmatpush1.msra.mxu0 0.0
    %888 = vmatprep.subr.mxu0 0.0
    %889 = vmatpush1.msra.mxu0 0.0
    %890 = vmatprep.subr.mxu0 0.0
    %891 = vmatpush1.msra.mxu0 0.0
    %892 = vmatprep.subr.mxu0 0.0
    %893 = vmatpush1.msra.mxu0 0.0
    %894 = vmatprep.subr.mxu0 0.0
    %895 = vmatpush1.msra.mxu0 0.0
    %896 = vmatprep.subr.mxu0 0.0
    %897 = vmatpush1.msra.mxu0 0.0
    %898 = vmatprep.subr.mxu0 0.0
    %899 = vmatpush1.msra.mxu0 0.0
    %900 = vmatprep.subr.mxu0 0.0
    %901 = vmatpush1.msra.mxu0 0.0
    %902 = vmatprep.subr.mxu0 0.0
    %903 = vmatpush1.msra.mxu0 0.0
    %904 = vmatprep.subr.mxu0 0.0
    %905 = vmatpush1.msra.mxu0 0.0
    %906 = vmatprep.subr.mxu0 0.0
    %907 = vmatpush1.msra.mxu0 0.0
    %908 = vmatprep.subr.mxu0 0.0
    %909 = vmatpush1.msra.mxu0 0.0
    %910 = vmatprep.subr.mxu0 0.0
    %911 = vmatpush1.msra.mxu0 0.0
    %912 = vmatprep.subr.mxu0 0.0
    %913 = vmatpush1.msra.mxu0 0.0
    %914 = vmatprep.subr.mxu0 0.0
    %915 = vmatpush1.msra.mxu0 0.0
    %916 = vmatprep.subr.mxu0 0.0
    %917 = vmatpush1.msra.mxu0 0.0
    %918 = vmatprep.subr.mxu0 0.0
    %919 = vmatpush1.msra.mxu0 0.0
    %920 = vmatprep.subr.mxu0 0.0
    %921 = vmatpush1.msra.mxu0 0.0
    %922 = vmatprep.subr.mxu0 0.0
    %923 = vmatpush1.msra.mxu0 0.0
    %924 = vmatprep.subr.mxu0 0.0
    %925 = vmatpush1.msra.mxu0 0.0
    %926 = vmatprep.subr.mxu0 0.0
    %927 = vmatpush1.msra.mxu0 0.0
    %928 = vmatprep.subr.mxu0 0.0
    %929 = vmatpush1.msra.mxu0 0.0
    %930 = vmatprep.subr.mxu0 0.0
    %931 = vmatpush1.msra.mxu0 0.0
    %932 = vmatprep.subr.mxu0 0.0
    %933 = vmatpush1.msra.mxu0 0.0
    %934 = vmatprep.subr.mxu0 0.0
    %935 = vmatpush1.msra.mxu0 0.0
    %936 = vmatprep.mubr.f32.mxu0 0.0
    %937 = vmatmul.mubr.f32.gmra.mrb[0].mxu0 %v867
    %v938 = vpop.f32.mrb[0].mxu0
    %v939 = vadd.f32 0.0, %v938
    %v940 = vpop.f32.mrb[0].mxu0
    %941 = vmatprep.mubr.f32.mxu0 0.0
    %942 = vmatmul.mubr.f32.gmra.mrb[0].mxu0 %v870
    %v943 = vpop.f32.mrb[0].mxu0
    %v944 = vadd.f32 0.0, %v943
    %v945 = vpop.f32.mrb[0].mxu0
    %946 = vdwg.mxu0
    %949 = vrot.lane.b32.xlu0 %v939, 32
    %v950 = vpop.permute.xlu0 %949
    %951 = vrot.lane.b32.xlu0 %v944, 32
    %v952 = vpop.permute.xlu0 %951
    %v955 = vsel %vm460, %v669, %v950
    %v956 = vsel %vm460, %v674, %v952
    %v957 = vpack.c.bf16 %v956, %v955
    %v958 = vld [vmem:[%s6] sm:$0xf]
    %v959 = vld [vmem:[%s6 + $0x4] sm:$0xf]
    %v960 = vld [vmem:[%s6 + $0x8] sm:$0xf]
    %v961 = vld [vmem:[%s6 + $0xc] sm:$0xf]
    %v962 = vld [vmem:[%s6 + $0x10] sm:$0xf]
    %v963 = vld [vmem:[%s6 + $0x14] sm:$0xf]
    %v964 = vld [vmem:[%s6 + $0x18] sm:$0xf]
    %v965 = vld [vmem:[%s6 + $0x1c] sm:$0xf]
    %v974 = vunpack.c.l.b16 %v958
    %v975 = vunpack.c.l.b16 %v959
    %v976 = vunpack.c.l.b16 %v960
    %v977 = vunpack.c.l.b16 %v961
    %v978 = vunpack.c.l.b16 %v962
    %v979 = vunpack.c.l.b16 %v963
    %v980 = vunpack.c.l.b16 %v964
    %v981 = vunpack.c.l.b16 %v965
    %v982 = vpack.c.b16 %v975, %v974
    %v983 = vpack.c.b16 %v977, %v976
    %v984 = vpack.c.b16 %v979, %v978
    %v985 = vpack.c.b16 %v981, %v980
    %v991 = vsel %vm238, %v957, 0
    %993 = vmatprep.subr.bf16.mxu0 0
    %994 = vmatpush1.bf16.msra.mxu0 %v982
    %995 = vmatprep.subr.bf16.mxu0 0
    %996 = vmatpush1.bf16.msra.mxu0 %v983
    %997 = vmatprep.subr.bf16.mxu0 0
    %998 = vmatpush1.bf16.msra.mxu0 %v984
    %999 = vmatprep.subr.bf16.mxu0 0
    %1000 = vmatpush1.bf16.msra.mxu0 %v985
    %1001 = vmatprep.subr.bf16.mxu0 0
    %1002 = vmatpush1.bf16.msra.mxu0 0
    %1003 = vmatprep.subr.bf16.mxu0 0
    %1004 = vmatpush1.bf16.msra.mxu0 0
    %1005 = vmatprep.subr.bf16.mxu0 0
    %1006 = vmatpush1.bf16.msra.mxu0 0
    %1007 = vmatprep.subr.bf16.mxu0 0
    %1008 = vmatpush1.bf16.msra.mxu0 0
    %1009 = vmatprep.subr.bf16.mxu0 0
    %1010 = vmatpush1.bf16.msra.mxu0 0
    %1011 = vmatprep.subr.bf16.mxu0 0
    %1012 = vmatpush1.bf16.msra.mxu0 0
    %1013 = vmatprep.subr.bf16.mxu0 0
    %1014 = vmatpush1.bf16.msra.mxu0 0
    %1015 = vmatprep.subr.bf16.mxu0 0
    %1016 = vmatpush1.bf16.msra.mxu0 0
    %1017 = vmatprep.subr.bf16.mxu0 0
    %1018 = vmatpush1.bf16.msra.mxu0 0
    %1019 = vmatprep.subr.bf16.mxu0 0
    %1020 = vmatpush1.bf16.msra.mxu0 0
    %1021 = vmatprep.subr.bf16.mxu0 0
    %1022 = vmatpush1.bf16.msra.mxu0 0
    %1023 = vmatprep.subr.bf16.mxu0 0
    %1024 = vmatpush1.bf16.msra.mxu0 0
    %1025 = vmatprep.mubr.bf16.mxu0 0
    %1026 = vmatmul.mubr.bf16.gmra.mrb[0].mxu0 %v991
    %v1027 = vpop.f32.mrb[0].mxu0
    %v1028 = vadd.f32 0.0, %v1027
    %v1029 = vpop.f32.mrb[0].mxu0
    %v1030 = vpop.f32.mrb[0].mxu0
    %v1031 = vadd.f32 0.0, %v1030
    %v1032 = vpop.f32.mrb[0].mxu0
    %1033 = vdwg.mxu0
    %v1034 = vadd.f32 %v51, %v1028
    %v1035 = vadd.f32 %v52, %v1031
    %v1036 = vld [vmem:[%s7] sm:$0x1]
    %v1037 = vmul.f32 %v1034, %v1034
    %v1038 = vmul.f32 %v1035, %v1035
    %1039 = vadd.xlane.f32.xlu0 %v1037
    %v1040 = vpop.xlane.xlu0 %1039
    %1041 = vadd.xlane.f32.xlu0 %v1038
    %v1042 = vpop.xlane.xlu0 %1041
    %v1043 = vmul.f32 %v1040, %v78
    %v1044 = vmul.f32 %v1042, %v78
    %v1045 = vadd.f32 %v1043, 1e-06
    %v1046 = vadd.f32 %v1044, 1e-06
    %v1047 = vrsqrt.pop %v1045
    %v1048 = vrsqrt.pop %v1046
    %v1049 = vmul.f32 %v1034, %v1047
    %v1050 = vmul.f32 %v1035, %v1048
    %v1052 = vlaneseq
    %v1053 = vshrl.u32 %v1052, 7
    %v1054 = vsub.s32 0, %v1053
    %v1055 = vrot.slane %v1036, %v1054
    %v1057 = vmul.f32 %v1049, %v1055
    %v1058 = vmul.f32 %v1050, %v1055
    %v1059 = vpack.c.bf16 %v1058, %v1057
    %v1060 = vld [vmem:[#allocation2] sm:$0xff]
    %v1061 = vld [vmem:[#allocation2 + $0x8] sm:$0xff]
    %v1062 = vld [vmem:[#allocation2 + $0x10] sm:$0xff]
    %v1063 = vld [vmem:[#allocation2 + $0x18] sm:$0xff]
    %v1064 = vld [vmem:[#allocation2 + $0x20] sm:$0xff]
    %v1065 = vld [vmem:[#allocation2 + $0x28] sm:$0xff]
    %v1066 = vld [vmem:[#allocation2 + $0x30] sm:$0xff]
    %v1067 = vld [vmem:[#allocation2 + $0x38] sm:$0xff]
    %v1068 = vld [vmem:[#allocation2 + $0x40] sm:$0xff]
    %v1069 = vld [vmem:[#allocation2 + $0x48] sm:$0xff]
    %v1070 = vld [vmem:[#allocation2 + $0x50] sm:$0xff]
    %v1071 = vld [vmem:[#allocation2 + $0x58] sm:$0xff]
    %v1072 = vld [vmem:[#allocation2 + $0x60] sm:$0xff]
    %v1073 = vld [vmem:[#allocation2 + $0x68] sm:$0xff]
    %v1074 = vld [vmem:[#allocation2 + $0x70] sm:$0xff]
    %v1075 = vld [vmem:[#allocation2 + $0x78] sm:$0xff]
    %v1076 = vld [vmem:[#allocation2 + $0x80] sm:$0xff]
    %v1077 = vld [vmem:[#allocation2 + $0x88] sm:$0xff]
    %v1078 = vld [vmem:[#allocation2 + $0x90] sm:$0xff]
    %v1079 = vld [vmem:[#allocation2 + $0x98] sm:$0xff]
    %v1080 = vld [vmem:[#allocation2 + $0xa0] sm:$0xff]
    %v1081 = vld [vmem:[#allocation2 + $0xa8] sm:$0xff]
    %v1082 = vld [vmem:[#allocation2 + $0xb0] sm:$0xff]
    %v1083 = vld [vmem:[#allocation2 + $0xb8] sm:$0xff]
    %v1084 = vld [vmem:[#allocation2 + $0xc0] sm:$0xff]
    %v1085 = vld [vmem:[#allocation2 + $0xc8] sm:$0xff]
    %v1086 = vld [vmem:[#allocation2 + $0xd0] sm:$0xff]
    %v1087 = vld [vmem:[#allocation2 + $0xd8] sm:$0xff]
    %v1088 = vld [vmem:[#allocation2 + $0xe0] sm:$0xff]
    %v1089 = vld [vmem:[#allocation2 + $0xe8] sm:$0xff]
    %v1090 = vld [vmem:[#allocation2 + $0xf0] sm:$0xff]
    %v1091 = vld [vmem:[#allocation2 + $0xf8] sm:$0xff]
    %v1124 = vunpack.c.l.b16 %v1060
    %v1125 = vunpack.c.h.b16 %v1060
    %v1126 = vunpack.c.l.b16 %v1061
    %v1127 = vunpack.c.h.b16 %v1061
    %v1128 = vunpack.c.l.b16 %v1062
    %v1129 = vunpack.c.h.b16 %v1062
    %v1130 = vunpack.c.l.b16 %v1063
    %v1131 = vunpack.c.h.b16 %v1063
    %v1132 = vunpack.c.l.b16 %v1064
    %v1133 = vunpack.c.h.b16 %v1064
    %v1134 = vunpack.c.l.b16 %v1065
    %v1135 = vunpack.c.h.b16 %v1065
    %v1136 = vunpack.c.l.b16 %v1066
    %v1137 = vunpack.c.h.b16 %v1066
    %v1138 = vunpack.c.l.b16 %v1067
    %v1139 = vunpack.c.h.b16 %v1067
    %v1140 = vunpack.c.l.b16 %v1068
    %v1141 = vunpack.c.h.b16 %v1068
    %v1142 = vunpack.c.l.b16 %v1069
    %v1143 = vunpack.c.h.b16 %v1069
    %v1144 = vunpack.c.l.b16 %v1070
    %v1145 = vunpack.c.h.b16 %v1070
    %v1146 = vunpack.c.l.b16 %v1071
    %v1147 = vunpack.c.h.b16 %v1071
    %v1148 = vunpack.c.l.b16 %v1072
    %v1149 = vunpack.c.h.b16 %v1072
    %v1150 = vunpack.c.l.b16 %v1073
    %v1151 = vunpack.c.h.b16 %v1073
    %v1152 = vunpack.c.l.b16 %v1074
    %v1153 = vunpack.c.h.b16 %v1074
    %v1154 = vunpack.c.l.b16 %v1075
    %v1155 = vunpack.c.h.b16 %v1075
    %v1156 = vunpack.c.l.b16 %v1076
    %v1157 = vunpack.c.h.b16 %v1076
    %v1158 = vunpack.c.l.b16 %v1077
    %v1159 = vunpack.c.h.b16 %v1077
    %v1160 = vunpack.c.l.b16 %v1078
    %v1161 = vunpack.c.h.b16 %v1078
    %v1162 = vunpack.c.l.b16 %v1079
    %v1163 = vunpack.c.h.b16 %v1079
    %v1164 = vunpack.c.l.b16 %v1080
    %v1165 = vunpack.c.h.b16 %v1080
    %v1166 = vunpack.c.l.b16 %v1081
    %v1167 = vunpack.c.h.b16 %v1081
    %v1168 = vunpack.c.l.b16 %v1082
    %v1169 = vunpack.c.h.b16 %v1082
    %v1170 = vunpack.c.l.b16 %v1083
    %v1171 = vunpack.c.h.b16 %v1083
    %v1172 = vunpack.c.l.b16 %v1084
    %v1173 = vunpack.c.h.b16 %v1084
    %v1174 = vunpack.c.l.b16 %v1085
    %v1175 = vunpack.c.h.b16 %v1085
    %v1176 = vunpack.c.l.b16 %v1086
    %v1177 = vunpack.c.h.b16 %v1086
    %v1178 = vunpack.c.l.b16 %v1087
    %v1179 = vunpack.c.h.b16 %v1087
    %v1180 = vunpack.c.l.b16 %v1088
    %v1181 = vunpack.c.h.b16 %v1088
    %v1182 = vunpack.c.l.b16 %v1089
    %v1183 = vunpack.c.h.b16 %v1089
    %v1184 = vunpack.c.l.b16 %v1090
    %v1185 = vunpack.c.h.b16 %v1090
    %v1186 = vunpack.c.l.b16 %v1091
    %v1187 = vunpack.c.h.b16 %v1091
    %v1188 = vpack.c.b16 %v1128, %v1124
    %v1189 = vpack.c.b16 %v1129, %v1125
    %v1190 = vpack.c.b16 %v1130, %v1126
    %v1191 = vpack.c.b16 %v1131, %v1127
    %v1192 = vpack.c.b16 %v1136, %v1132
    %v1193 = vpack.c.b16 %v1137, %v1133
    %v1194 = vpack.c.b16 %v1138, %v1134
    %v1195 = vpack.c.b16 %v1139, %v1135
    %v1196 = vpack.c.b16 %v1144, %v1140
    %v1197 = vpack.c.b16 %v1145, %v1141
    %v1198 = vpack.c.b16 %v1146, %v1142
    %v1199 = vpack.c.b16 %v1147, %v1143
    %v1200 = vpack.c.b16 %v1152, %v1148
    %v1201 = vpack.c.b16 %v1153, %v1149
    %v1202 = vpack.c.b16 %v1154, %v1150
    %v1203 = vpack.c.b16 %v1155, %v1151
    %v1204 = vpack.c.b16 %v1160, %v1156
    %v1205 = vpack.c.b16 %v1161, %v1157
    %v1206 = vpack.c.b16 %v1162, %v1158
    %v1207 = vpack.c.b16 %v1163, %v1159
    %v1208 = vpack.c.b16 %v1168, %v1164
    %v1209 = vpack.c.b16 %v1169, %v1165
    %v1210 = vpack.c.b16 %v1170, %v1166
    %v1211 = vpack.c.b16 %v1171, %v1167
    %v1212 = vpack.c.b16 %v1176, %v1172
    %v1213 = vpack.c.b16 %v1177, %v1173
    %v1214 = vpack.c.b16 %v1178, %v1174
    %v1215 = vpack.c.b16 %v1179, %v1175
    %v1216 = vpack.c.b16 %v1184, %v1180
    %v1217 = vpack.c.b16 %v1185, %v1181
    %v1218 = vpack.c.b16 %v1186, %v1182
    %v1219 = vpack.c.b16 %v1187, %v1183
    %1252 = vmatprep.subr.bf16.mxu0 %v1189
    %1253 = vmatpush1.bf16.msra.mxu0 %v1188
    %1254 = vmatprep.subr.bf16.mxu0 %v1193
    %1255 = vmatpush1.bf16.msra.mxu0 %v1192
    %1256 = vmatprep.subr.bf16.mxu0 %v1197
    %1257 = vmatpush1.bf16.msra.mxu0 %v1196
    %1258 = vmatprep.subr.bf16.mxu0 %v1201
    %1259 = vmatpush1.bf16.msra.mxu0 %v1200
    %1260 = vmatprep.subr.bf16.mxu0 %v1205
    %1261 = vmatpush1.bf16.msra.mxu0 %v1204
    %1262 = vmatprep.subr.bf16.mxu0 %v1209
    %1263 = vmatpush1.bf16.msra.mxu0 %v1208
    %1264 = vmatprep.subr.bf16.mxu0 %v1213
    %1265 = vmatpush1.bf16.msra.mxu0 %v1212
    %1266 = vmatprep.subr.bf16.mxu0 %v1217
    %1267 = vmatpush1.bf16.msra.mxu0 %v1216
    %1268 = vmatprep.subr.bf16.mxu0 0
    %1269 = vmatpush1.bf16.msra.mxu0 0
    %1270 = vmatprep.subr.bf16.mxu0 0
    %1271 = vmatpush1.bf16.msra.mxu0 0
    %1272 = vmatprep.subr.bf16.mxu0 0
    %1273 = vmatpush1.bf16.msra.mxu0 0
    %1274 = vmatprep.subr.bf16.mxu0 0
    %1275 = vmatpush1.bf16.msra.mxu0 0
    %1276 = vmatprep.subr.bf16.mxu0 0
    %1277 = vmatpush1.bf16.msra.mxu0 0
    %1278 = vmatprep.subr.bf16.mxu0 0
    %1279 = vmatpush1.bf16.msra.mxu0 0
    %1280 = vmatprep.subr.bf16.mxu0 0
    %1281 = vmatpush1.bf16.msra.mxu0 0
    %1282 = vmatprep.subr.bf16.mxu0 0
    %1283 = vmatpush1.bf16.msra.mxu0 0
    %1284 = vmatprep.mubr.bf16.mxu0 0
    %1285 = vmatmul.mubr.bf16.gmra.mrb[0].mxu0 %v1059
    %v1286 = vpop.f32.mrb[0].mxu0
    %v1287 = vadd.f32 0.0, %v1286
    %v1288 = vpop.f32.mrb[0].mxu0
    %v1289 = vadd.f32 0.0, %v1288
    %v1290 = vpop.f32.mrb[0].mxu0
    %v1291 = vadd.f32 0.0, %v1290
    %v1292 = vpop.f32.mrb[0].mxu0
    %v1293 = vadd.f32 0.0, %v1292
    %1294 = vdwg.mxu0
    %1295 = vmatprep.subr.bf16.mxu0 %v1191
    %1296 = vmatpush1.bf16.msra.mxu0 %v1190
    %1297 = vmatprep.subr.bf16.mxu0 %v1195
    %1298 = vmatpush1.bf16.msra.mxu0 %v1194
    %1299 = vmatprep.subr.bf16.mxu0 %v1199
    %1300 = vmatpush1.bf16.msra.mxu0 %v1198
    %1301 = vmatprep.subr.bf16.mxu0 %v1203
    %1302 = vmatpush1.bf16.msra.mxu0 %v1202
    %1303 = vmatprep.subr.bf16.mxu0 %v1207
    %1304 = vmatpush1.bf16.msra.mxu0 %v1206
    %1305 = vmatprep.subr.bf16.mxu0 %v1211
    %1306 = vmatpush1.bf16.msra.mxu0 %v1210
    %1307 = vmatprep.subr.bf16.mxu0 %v1215
    %1308 = vmatpush1.bf16.msra.mxu0 %v1214
    %1309 = vmatprep.subr.bf16.mxu0 %v1219
    %1310 = vmatpush1.bf16.msra.mxu0 %v1218
    %1311 = vmatprep.subr.bf16.mxu0 0
    %1312 = vmatpush1.bf16.msra.mxu0 0
    %1313 = vmatprep.subr.bf16.mxu0 0
    %1314 = vmatpush1.bf16.msra.mxu0 0
    %1315 = vmatprep.subr.bf16.mxu0 0
    %1316 = vmatpush1.bf16.msra.mxu0 0
    %1317 = vmatprep.subr.bf16.mxu0 0
    %1318 = vmatpush1.bf16.msra.mxu0 0
    %1319 = vmatprep.subr.bf16.mxu0 0
    %1320 = vmatpush1.bf16.msra.mxu0 0
    %1321 = vmatprep.subr.bf16.mxu0 0
    %1322 = vmatpush1.bf16.msra.mxu0 0
    %1323 = vmatprep.subr.bf16.mxu0 0
    %1324 = vmatpush1.bf16.msra.mxu0 0
    %1325 = vmatprep.subr.bf16.mxu0 0
    %1326 = vmatpush1.bf16.msra.mxu0 0
    %1327 = vmatprep.mubr.bf16.mxu0 0
    %1328 = vmatmul.mubr.bf16.gmra.mrb[0].mxu0 %v1059
    %v1329 = vpop.f32.mrb[0].mxu0
    %v1330 = vadd.f32 0.0, %v1329
    %v1331 = vpop.f32.mrb[0].mxu0
    %v1332 = vadd.f32 0.0, %v1331
    %v1333 = vpop.f32.mrb[0].mxu0
    %v1334 = vadd.f32 0.0, %v1333
    %v1335 = vpop.f32.mrb[0].mxu0
    %v1336 = vadd.f32 0.0, %v1335
    %1337 = vdwg.mxu0
    %v1338 = vmul.f32 %v1287, 0.5
    %v1339 = vmul.f32 %v1289, 0.5
    %v1340 = vmul.f32 %v1291, 0.5
    %v1341 = vmul.f32 %v1293, 0.5
    %v1342 = vtanh.pop %v1338
    %v1343 = vtanh.pop %v1339
    %v1344 = vtanh.pop %v1340
    %v1345 = vtanh.pop %v1341
    %v1346 = vadd.f32 %v1342, 1.0
    %v1347 = vadd.f32 %v1343, 1.0
    %v1348 = vadd.f32 %v1344, 1.0
    %v1349 = vadd.f32 %v1345, 1.0
    %v1350 = vmul.f32 %v1346, 0.5
    %v1351 = vmul.f32 %v1347, 0.5
    %v1352 = vmul.f32 %v1348, 0.5
    %v1353 = vmul.f32 %v1349, 0.5
    %v1354 = vmul.f32 %v1287, %v1350
    %v1355 = vmul.f32 %v1289, %v1351
    %v1356 = vmul.f32 %v1291, %v1352
    %v1357 = vmul.f32 %v1293, %v1353
    %v1358 = vmul.f32 %v1354, %v1330
    %v1359 = vmul.f32 %v1355, %v1332
    %v1360 = vmul.f32 %v1356, %v1334
    %v1361 = vmul.f32 %v1357, %v1336
    %v1362 = vpack.c.bf16 %v1360, %v1358
    %v1363 = vpack.c.bf16 %v1361, %v1359
    %v1364 = vld [vmem:[%s9] sm:$0xf]
    %v1365 = vld [vmem:[%s9 + $0x4] sm:$0xf]
    %v1366 = vld [vmem:[%s9 + $0x8] sm:$0xf]
    %v1367 = vld [vmem:[%s9 + $0xc] sm:$0xf]
    %v1368 = vld [vmem:[%s9 + $0x10] sm:$0xf]
    %v1369 = vld [vmem:[%s9 + $0x14] sm:$0xf]
    %v1370 = vld [vmem:[%s9 + $0x18] sm:$0xf]
    %v1371 = vld [vmem:[%s9 + $0x1c] sm:$0xf]
    %v1372 = vld [vmem:[%s9 + $0x20] sm:$0xf]
    %v1373 = vld [vmem:[%s9 + $0x24] sm:$0xf]
    %v1374 = vld [vmem:[%s9 + $0x28] sm:$0xf]
    %v1375 = vld [vmem:[%s9 + $0x2c] sm:$0xf]
    %v1376 = vld [vmem:[%s9 + $0x30] sm:$0xf]
    %v1377 = vld [vmem:[%s9 + $0x34] sm:$0xf]
    %v1378 = vld [vmem:[%s9 + $0x38] sm:$0xf]
    %v1379 = vld [vmem:[%s9 + $0x3c] sm:$0xf]
    %v1380 = vld [vmem:[%s9 + $0x40] sm:$0xf]
    %v1381 = vld [vmem:[%s9 + $0x44] sm:$0xf]
    %v1382 = vld [vmem:[%s9 + $0x48] sm:$0xf]
    %v1383 = vld [vmem:[%s9 + $0x4c] sm:$0xf]
    %v1384 = vld [vmem:[%s9 + $0x50] sm:$0xf]
    %v1385 = vld [vmem:[%s9 + $0x54] sm:$0xf]
    %v1386 = vld [vmem:[%s9 + $0x58] sm:$0xf]
    %v1387 = vld [vmem:[%s9 + $0x5c] sm:$0xf]
    %v1388 = vld [vmem:[%s9 + $0x60] sm:$0xf]
    %v1389 = vld [vmem:[%s9 + $0x64] sm:$0xf]
    %v1390 = vld [vmem:[%s9 + $0x68] sm:$0xf]
    %v1391 = vld [vmem:[%s9 + $0x6c] sm:$0xf]
    %v1392 = vld [vmem:[%s9 + $0x70] sm:$0xf]
    %v1393 = vld [vmem:[%s9 + $0x74] sm:$0xf]
    %v1394 = vld [vmem:[%s9 + $0x78] sm:$0xf]
    %v1395 = vld [vmem:[%s9 + $0x7c] sm:$0xf]
    %v1428 = vunpack.c.l.b16 %v1364
    %v1429 = vunpack.c.l.b16 %v1365
    %v1430 = vunpack.c.l.b16 %v1366
    %v1431 = vunpack.c.l.b16 %v1367
    %v1432 = vunpack.c.l.b16 %v1368
    %v1433 = vunpack.c.l.b16 %v1369
    %v1434 = vunpack.c.l.b16 %v1370
    %v1435 = vunpack.c.l.b16 %v1371
    %v1436 = vunpack.c.l.b16 %v1372
    %v1437 = vunpack.c.l.b16 %v1373
    %v1438 = vunpack.c.l.b16 %v1374
    %v1439 = vunpack.c.l.b16 %v1375
    %v1440 = vunpack.c.l.b16 %v1376
    %v1441 = vunpack.c.l.b16 %v1377
    %v1442 = vunpack.c.l.b16 %v1378
    %v1443 = vunpack.c.l.b16 %v1379
    %v1444 = vunpack.c.l.b16 %v1380
    %v1445 = vunpack.c.l.b16 %v1381
    %v1446 = vunpack.c.l.b16 %v1382
    %v1447 = vunpack.c.l.b16 %v1383
    %v1448 = vunpack.c.l.b16 %v1384
    %v1449 = vunpack.c.l.b16 %v1385
    %v1450 = vunpack.c.l.b16 %v1386
    %v1451 = vunpack.c.l.b16 %v1387
    %v1452 = vunpack.c.l.b16 %v1388
    %v1453 = vunpack.c.l.b16 %v1389
    %v1454 = vunpack.c.l.b16 %v1390
    %v1455 = vunpack.c.l.b16 %v1391
    %v1456 = vunpack.c.l.b16 %v1392
    %v1457 = vunpack.c.l.b16 %v1393
    %v1458 = vunpack.c.l.b16 %v1394
    %v1459 = vunpack.c.l.b16 %v1395
    %v1460 = vpack.c.b16 %v1429, %v1428
    %v1461 = vpack.c.b16 %v1431, %v1430
    %v1462 = vpack.c.b16 %v1433, %v1432
    %v1463 = vpack.c.b16 %v1435, %v1434
    %v1464 = vpack.c.b16 %v1437, %v1436
    %v1465 = vpack.c.b16 %v1439, %v1438
    %v1466 = vpack.c.b16 %v1441, %v1440
    %v1467 = vpack.c.b16 %v1443, %v1442
    %v1468 = vpack.c.b16 %v1445, %v1444
    %v1469 = vpack.c.b16 %v1447, %v1446
    %v1470 = vpack.c.b16 %v1449, %v1448
    %v1471 = vpack.c.b16 %v1451, %v1450
    %v1472 = vpack.c.b16 %v1453, %v1452
    %v1473 = vpack.c.b16 %v1455, %v1454
    %v1474 = vpack.c.b16 %v1457, %v1456
    %v1475 = vpack.c.b16 %v1459, %v1458
    %1492 = vmatprep.subr.bf16.mxu0 0
    %1493 = vmatpush1.bf16.msra.mxu0 %v1460
    %1494 = vmatprep.subr.bf16.mxu0 0
    %1495 = vmatpush1.bf16.msra.mxu0 %v1461
    %1496 = vmatprep.subr.bf16.mxu0 0
    %1497 = vmatpush1.bf16.msra.mxu0 %v1462
    %1498 = vmatprep.subr.bf16.mxu0 0
    %1499 = vmatpush1.bf16.msra.mxu0 %v1463
    %1500 = vmatprep.subr.bf16.mxu0 0
    %1501 = vmatpush1.bf16.msra.mxu0 %v1464
    %1502 = vmatprep.subr.bf16.mxu0 0
    %1503 = vmatpush1.bf16.msra.mxu0 %v1465
    %1504 = vmatprep.subr.bf16.mxu0 0
    %1505 = vmatpush1.bf16.msra.mxu0 %v1466
    %1506 = vmatprep.subr.bf16.mxu0 0
    %1507 = vmatpush1.bf16.msra.mxu0 %v1467
    %1508 = vmatprep.subr.bf16.mxu0 0
    %1509 = vmatpush1.bf16.msra.mxu0 %v1468
    %1510 = vmatprep.subr.bf16.mxu0 0
    %1511 = vmatpush1.bf16.msra.mxu0 %v1469
    %1512 = vmatprep.subr.bf16.mxu0 0
    %1513 = vmatpush1.bf16.msra.mxu0 %v1470
    %1514 = vmatprep.subr.bf16.mxu0 0
    %1515 = vmatpush1.bf16.msra.mxu0 %v1471
    %1516 = vmatprep.subr.bf16.mxu0 0
    %1517 = vmatpush1.bf16.msra.mxu0 %v1472
    %1518 = vmatprep.subr.bf16.mxu0 0
    %1519 = vmatpush1.bf16.msra.mxu0 %v1473
    %1520 = vmatprep.subr.bf16.mxu0 0
    %1521 = vmatpush1.bf16.msra.mxu0 %v1474
    %1522 = vmatprep.subr.bf16.mxu0 0
    %1523 = vmatpush1.bf16.msra.mxu0 %v1475
    %1524 = vmatprep.mubr.bf16.mxu0 %v1363
    %1525 = vmatmul.mubr.bf16.gmra.mrb[0].mxu0 %v1362
    %v1526 = vpop.f32.mrb[0].mxu0
    %v1527 = vadd.f32 0.0, %v1526
    %v1528 = vpop.f32.mrb[0].mxu0
    %v1529 = vpop.f32.mrb[0].mxu0
    %v1530 = vadd.f32 0.0, %v1529
    %v1531 = vpop.f32.mrb[0].mxu0
    %1532 = vdwg.mxu0
    %v1533 = vadd.f32 %v1034, %v1527
    %v1534 = vadd.f32 %v1035, %v1530
    %1535 = vst [vmem:[#allocation5] sm:$0xff] %v1533
    %1536 = vst [vmem:[#allocation5 + $0x8] sm:$0xff] %v1534
    // Predicated region
    $region46: #{tpu_custom_call.1} parent=1 // pred_check
      _
    $region47: #{tpu_custom_call.1} parent=1 // pred_check_branch
      %1538 = sbr.rel (0) target = $region49
    $region48: #{tpu_custom_call.1} parent=1 // pred_region
      %s1540 = ssub.s32 256, 256
      %1541 = vsyncadd [#allocation4], %s1540
      %s1542 = sshll.u32 [#allocation5], 4
      %s1543 = int_to_ptr.vmem [resolvable:$true] %s1542
      %1548 = dma.vmem_to_hbm [thread:$0]  %s1543, 256, %s10, [#allocation4], 128, 128, 8
    $region49: #{tpu_custom_call.1} parent=1 // pred_fallthru
      _
    // Predicated region
    $region50: #{tpu_custom_call.1} parent=1 // pred_check
      _
    $region51: #{tpu_custom_call.1} parent=1 // pred_check_branch
      %1550 = sbr.rel (0) target = $region53
    $region52: #{tpu_custom_call.1} parent=1 // pred_region
      %1551 = dma.done [#allocation4], 256
    $region53: #{tpu_custom_call.1} parent=1 // pred_fallthru
      _
    %1552 = vsyncpa [#allocation3], 1
    %1553 = vsyncpa [#allocation4], 1

</llo_original>
